<compile_context>
chip_gen: v6e
topology: v6e:2x2x1
jax: 0.10.0
libtpu: 0.0.40
codegen_flags: <defaults>
</compile_context>

<pallas_src>
import functools

import jax
import jax.numpy as jnp
from jax.experimental import pallas as pl
from jax.experimental.pallas import tpu as pltpu

# ----- model dimensions (consistent with the PyTorch module) -----
IMG_FEAT = 2048        # resnet50 fc.in_features
TXT_FEAT = 128         # text-model penultimate width (synthetic)
HEAD = 256             # each branch head -> 256, concat -> 512
NUM_CLASSES = 16       # len(decoder) (synthetic)
PAD_CLASSES = 128      # lane-dense padded class dim for the kernel output
MAX_TILE_B = 256       # v5e cap: (256,2048) f32 tile = 2 MiB x2 buffers + ~2.6 MiB
                       # double-buffered bf16 weights ~= 7 MiB < 16 MiB scoped VMEM
SPLIT_THRESHOLD = 128  # above this, force >=2 grid steps (v7x has 2 TensorCores)


def _round_up(x, m):
    return ((x + m - 1) // m) * m


def _pick_tile_b(batch):
    """Batch-row tile: as large as possible (MXU M-fill, fewer ~0.35us grid
    steps), capped at MAX_TILE_B for v5e's scoped VMEM, and split into >=2
    grid steps for larger batches so both v7x TensorCores get work."""
    b8 = _round_up(batch, 8)
    if b8 <= SPLIT_THRESHOLD:
        return b8                              # single tile (B=1 latency path etc.)
    n_tiles = max(2, pl.cdiv(b8, MAX_TILE_B))  # >=2 steps for megacore sharding
    return _round_up(pl.cdiv(b8, n_tiles), 8)


def combined_head_kernel(img_ref, txt_ref,
                         w_img_ref, b_img_ref,
                         w_txt_ref, b_txt_ref,
                         wc_img_ref, wc_txt_ref, b_c_ref,
                         out_ref):
    """Fused image-head + text-head + combined classifier (one batch tile).

    img_ref   : (tile_b, IMG_FEAT) f32 or bf16
    txt_ref   : (tile_b, TXT_FEAT) f32 or bf16
    w_img_ref : (IMG_FEAT, HEAD) bf16,  b_img_ref : (1, HEAD) f32
    w_txt_ref : (TXT_FEAT, HEAD) bf16,  b_txt_ref : (1, HEAD) f32
    wc_img_ref: (HEAD, PAD_CLASSES) bf16  -- rows 0..255 of Linear(512,C) weight
    wc_txt_ref: (HEAD, PAD_CLASSES) bf16  -- rows 256..511 of Linear(512,C) weight
    b_c_ref   : (1, PAD_CLASSES) f32
    out_ref   : (tile_b, PAD_CLASSES) f32
    """
    img = img_ref[...]
    txt = txt_ref[...]
    # MXU-native bf16 operands; skip the VALU cast if inputs arrive as bf16.
    if img.dtype != jnp.bfloat16:
        img = img.astype(jnp.bfloat16)
    if txt.dtype != jnp.bfloat16:
        txt = txt.astype(jnp.bfloat16)

    # image branch: Linear(2048, 256) + ReLU  (resnet50.fc replacement)
    op_img = jnp.dot(img, w_img_ref[...], preferred_element_type=jnp.float32)
    op_img = jnp.maximum(op_img + b_img_ref[...], 0.0)

    # text branch: retained linear layer of TextClassification -> (B, 256)
    op_txt = jnp.dot(txt, w_txt_ref[...], preferred_element_type=jnp.float32)
    op_txt = op_txt + b_txt_ref[...]

    # combined layer: Dropout(0.5) is identity in eval; Linear(512, C) as a
    # split-weight matmul over the concatenated 512-wide vector.
    logits = (jnp.dot(op_img.astype(jnp.bfloat16), wc_img_ref[...],
                      preferred_element_type=jnp.float32)
              + jnp.dot(op_txt.astype(jnp.bfloat16), wc_txt_ref[...],
                        preferred_element_type=jnp.float32)
              + b_c_ref[...])
    out_ref[...] = logits


def prepare_params(params):
    """One-time weight prep: split the combined weight into its image/text
    halves, pad the class dim to a lane-dense 128, cast weights to bf16."""
    (w_img, b_img, w_txt, b_txt, w_c, b_c) = params
    pad_c = PAD_CLASSES - NUM_CLASSES
    wc_img = jnp.pad(w_c[:HEAD, :], ((0, 0), (0, pad_c)))
    wc_txt = jnp.pad(w_c[HEAD:, :], ((0, 0), (0, pad_c)))
    b_c_p = jnp.pad(b_c, ((0, pad_c),))
    return (w_img.astype(jnp.bfloat16),
            b_img.reshape(1, HEAD).astype(jnp.float32),
            w_txt.astype(jnp.bfloat16),
            b_txt.reshape(1, HEAD).astype(jnp.float32),
            wc_img.astype(jnp.bfloat16),
            wc_txt.astype(jnp.bfloat16),
            b_c_p.reshape(1, PAD_CLASSES).astype(jnp.float32))


@functools.partial(jax.jit, static_argnames=("tile_b",))
def _combined_forward_impl(img_feat, txt_feat, prepared, tile_b):
    """Batched head forward.  Weights stay VMEM-resident across the batch grid
    (constant index_maps -> DMA'd once); only activation/output tiles stream."""
    (w_img, b_img, w_txt, b_txt, wc_img, wc_txt, b_c) = prepared

    batch = img_feat.shape[0]
    b_pad = _round_up(batch, tile_b)
    if b_pad != batch:
        # Only the ragged tail is padded; when batch % tile_b == 0 (the common
        # large-batch serving case) the activation path is copy-free.
        img_feat = jnp.pad(img_feat, ((0, b_pad - batch), (0, 0)))
        txt_feat = jnp.pad(txt_feat, ((0, b_pad - batch), (0, 0)))

    const = lambda i: (0, 0)   # weight blocks: same tile every grid step
    out = pl.pallas_call(
        combined_head_kernel,
        out_shape=jax.ShapeDtypeStruct((b_pad, PAD_CLASSES), jnp.float32),
        grid=(b_pad // tile_b,),
        in_specs=[
            pl.BlockSpec((tile_b, IMG_FEAT), lambda i: (i, 0)),
            pl.BlockSpec((tile_b, TXT_FEAT), lambda i: (i, 0)),
            pl.BlockSpec((IMG_FEAT, HEAD), const),
            pl.BlockSpec((1, HEAD), const),
            pl.BlockSpec((TXT_FEAT, HEAD), const),
            pl.BlockSpec((1, HEAD), const),
            pl.BlockSpec((HEAD, PAD_CLASSES), const),
            pl.BlockSpec((HEAD, PAD_CLASSES), const),
            pl.BlockSpec((1, PAD_CLASSES), const),
        ],
        out_specs=pl.BlockSpec((tile_b, PAD_CLASSES), lambda i: (i, 0)),
        compiler_params=pltpu.CompilerParams(
            dimension_semantics=("parallel",)),
    )(img_feat, txt_feat, w_img, b_img, w_txt, b_txt, wc_img, wc_txt, b_c)

    return out[:batch, :NUM_CLASSES]


def combined_forward(img_feat, txt_feat, prepared):
    """Public entry: picks the batch tile, then calls the jitted kernel."""
    tile_b = _pick_tile_b(img_feat.shape[0])
    return _combined_forward_impl(img_feat, txt_feat, prepared, tile_b)


def init_params(key):
    """Deterministic synthetic parameter init (shapes from the module).
    PyTorch nn.Linear computes x @ W.T + b; weights here are stored
    pre-transposed as (in, out) so the kernel does x @ W + b."""
    ks = jax.random.split(key, 6)
    w_img = jax.random.normal(ks[0], (IMG_FEAT, HEAD), jnp.float32) * 0.02
    b_img = jax.random.normal(ks[1], (HEAD,), jnp.float32) * 0.01
    w_txt = jax.random.normal(ks[2], (TXT_FEAT, HEAD), jnp.float32) * 0.02
    b_txt = jax.random.normal(ks[3], (HEAD,), jnp.float32) * 0.01
    w_c = jax.random.normal(ks[4], (2 * HEAD, NUM_CLASSES), jnp.float32) * 0.02
    b_c = jax.random.normal(ks[5], (NUM_CLASSES,), jnp.float32) * 0.01
    return (w_img, b_img, w_txt, b_txt, w_c, b_c)


def reference_forward(img_feat, txt_feat, params):
    """Pure-JAX f32 reference of the same forward pass (sanity check)."""
    (w_img, b_img, w_txt, b_txt, w_c, b_c) = params
    img_feat = img_feat.astype(jnp.float32)
    txt_feat = txt_feat.astype(jnp.float32)
    op_img = jnp.maximum(img_feat @ w_img + b_img, 0.0)
    op_txt = txt_feat @ w_txt + b_txt
    op = jnp.concatenate([op_img, op_txt], axis=1)      # (B, 512)
    return op @ w_c + b_c                                # Dropout eval = id


if __name__ == "__main__":
    key = jax.random.PRNGKey(0)
    k_param, k_img, k_txt = jax.random.split(key, 3)

    params = init_params(k_param)
    prepared = prepare_params(params)          # one-time split / pad / bf16 cast

    # TODO(synk): ResNet50 backbone and TextClassification conv backbone are
    # external pretrained sub-models; they are stood in for by these pooled
    # feature vectors (the kernel implements everything the module defines).

    # --- module-semantics case: single sample (forward uses unsqueeze(0)) ---
    img_feat = jax.random.normal(k_img, (1, IMG_FEAT), jnp.float32)
    txt_feat = jax.random.normal(k_txt, (1, TXT_FEAT), jnp.float32)

    logits = jax.block_until_ready(combined_forward(img_feat, txt_feat, prepared))
    ref = reference_forward(img_feat, txt_feat, params)
    assert logits.shape == (1, NUM_CLASSES)
    # bf16 weights/activations trade a little precision for half the DMA bytes.
    assert jnp.allclose(logits, ref, atol=5e-2, rtol=5e-2), "mismatch vs reference (B=1)"

    # --- small batched case: exercises ragged-tail padding (20 -> tile 24) ---
    k_img2, k_txt2 = jax.random.split(jax.random.PRNGKey(1), 2)
    img_b = jax.random.normal(k_img2, (20, IMG_FEAT), jnp.float32)
    txt_b = jax.random.normal(k_txt2, (20, TXT_FEAT), jnp.float32)
    logits_b = jax.block_until_ready(combined_forward(img_b, txt_b, prepared))
    ref_b = reference_forward(img_b, txt_b, params)
    assert logits_b.shape == (20, NUM_CLASSES)
    assert jnp.allclose(logits_b, ref_b, atol=5e-2, rtol=5e-2), "mismatch vs reference (B=20)"

    # --- bf16-activation path (backbone emits bf16; no in-kernel cast) ---
    logits_bf = jax.block_until_ready(
        combined_forward(img_b.astype(jnp.bfloat16), txt_b.astype(jnp.bfloat16), prepared))
    assert jnp.allclose(logits_bf, ref_b, atol=5e-2, rtol=5e-2), "mismatch vs reference (bf16 in)"

    # --- larger batch: multi-step grid (272 -> 2 tiles of 136, copy-free, both TCs on v7x) ---
    k_img3, k_txt3 = jax.random.split(jax.random.PRNGKey(2), 2)
    img_l = jax.random.normal(k_img3, (272, IMG_FEAT), jnp.float32)
    txt_l = jax.random.normal(k_txt3, (272, TXT_FEAT), jnp.float32)
    logits_l = jax.block_until_ready(combined_forward(img_l, txt_l, prepared))
    ref_l = reference_forward(img_l, txt_l, params)
    assert logits_l.shape == (272, NUM_CLASSES)
    assert jnp.allclose(logits_l, ref_l, atol=5e-2, rtol=5e-2), "mismatch vs reference (B=272)"

    print("KERNEL_OK")
</pallas_src>

<mosaic_0001>
module attributes {stable_mosaic.version = 11 : i64} {
  func.func @combined_head_kernel(%arg0: i32, %arg1: memref<8x2048xf32, #tpu.memory_space<vmem>>, %arg2: memref<8x128xf32, #tpu.memory_space<vmem>>, %arg3: memref<2048x256xbf16, #tpu.memory_space<vmem>>, %arg4: memref<1x256xf32, #tpu.memory_space<vmem>>, %arg5: memref<128x256xbf16, #tpu.memory_space<vmem>>, %arg6: memref<1x256xf32, #tpu.memory_space<vmem>>, %arg7: memref<256x128xbf16, #tpu.memory_space<vmem>>, %arg8: memref<256x128xbf16, #tpu.memory_space<vmem>>, %arg9: memref<1x128xf32, #tpu.memory_space<vmem>>, %arg10: memref<8x128xf32, #tpu.memory_space<vmem>>) attributes {dimension_semantics = [#tpu.dimension_semantics<parallel>], iteration_bounds = array<i64: 1>, scalar_prefetch = 0 : i64, scratch_operands = 0 : i64, tpu.core_type = #tpu.core_type<tc>, window_params = [{transform_indices = @transform_0, window_bounds = array<i64: 8, 2048>}, {transform_indices = @transform_1, window_bounds = array<i64: 8, 128>}, {pipeline_mode = #tpu.pipeline_mode<synchronous>, transform_indices = @transform_2, window_bounds = array<i64: 2048, 256>}, {pipeline_mode = #tpu.pipeline_mode<synchronous>, transform_indices = @transform_3, window_bounds = array<i64: 1, 256>}, {pipeline_mode = #tpu.pipeline_mode<synchronous>, transform_indices = @transform_4, window_bounds = array<i64: 128, 256>}, {pipeline_mode = #tpu.pipeline_mode<synchronous>, transform_indices = @transform_5, window_bounds = array<i64: 1, 256>}, {pipeline_mode = #tpu.pipeline_mode<synchronous>, transform_indices = @transform_6, window_bounds = array<i64: 256, 128>}, {pipeline_mode = #tpu.pipeline_mode<synchronous>, transform_indices = @transform_7, window_bounds = array<i64: 256, 128>}, {pipeline_mode = #tpu.pipeline_mode<synchronous>, transform_indices = @transform_8, window_bounds = array<i64: 1, 128>}, {transform_indices = @transform_9, window_bounds = array<i64: 8, 128>}]} {
    %c0 = arith.constant 0 : index
    %c0_0 = arith.constant 0 : index
    %0 = vector.load %arg1[%c0, %c0_0] : memref<8x2048xf32, #tpu.memory_space<vmem>>, vector<8x2048xf32>
    %c0_1 = arith.constant 0 : index
    %c0_2 = arith.constant 0 : index
    %1 = vector.load %arg2[%c0_1, %c0_2] : memref<8x128xf32, #tpu.memory_space<vmem>>, vector<8x128xf32>
    %2 = arith.truncf %0 : vector<8x2048xf32> to vector<8x2048xbf16>
    %3 = arith.truncf %1 : vector<8x128xf32> to vector<8x128xbf16>
    %c0_3 = arith.constant 0 : index
    %c0_4 = arith.constant 0 : index
    %4 = vector.load %arg3[%c0_3, %c0_4] : memref<2048x256xbf16, #tpu.memory_space<vmem>>, vector<2048x256xbf16>
    %cst = arith.constant dense<0.000000e+00> : vector<8x256xf32>
    %5 = tpu.matmul %2, %4, %cst {dimension_numbers = #tpu.dot_dimension_numbers<[1], [0], [0], [1], [0, 0, 1, 1], [], []>} : vector<8x2048xbf16>, vector<2048x256xbf16>, vector<8x256xf32> -> vector<8x256xf32>
    %c0_5 = arith.constant 0 : index
    %c0_6 = arith.constant 0 : index
    %6 = vector.load %arg4[%c0_5, %c0_6] : memref<1x256xf32, #tpu.memory_space<vmem>>, vector<1x256xf32>
    %7 = vector.broadcast %6 : vector<1x256xf32> to vector<8x256xf32>
    %8 = arith.addf %5, %7 : vector<8x256xf32>
    %cst_7 = arith.constant 0.000000e+00 : f32
    %9 = vector.broadcast %cst_7 : f32 to vector<8x256xf32>
    %10 = arith.maximumf %8, %9 : vector<8x256xf32>
    %c0_8 = arith.constant 0 : index
    %c0_9 = arith.constant 0 : index
    %11 = vector.load %arg5[%c0_8, %c0_9] : memref<128x256xbf16, #tpu.memory_space<vmem>>, vector<128x256xbf16>
    %cst_10 = arith.constant dense<0.000000e+00> : vector<8x256xf32>
    %12 = tpu.matmul %3, %11, %cst_10 {dimension_numbers = #tpu.dot_dimension_numbers<[1], [0], [0], [1], [0, 0, 1, 1], [], []>} : vector<8x128xbf16>, vector<128x256xbf16>, vector<8x256xf32> -> vector<8x256xf32>
    %c0_11 = arith.constant 0 : index
    %c0_12 = arith.constant 0 : index
    %13 = vector.load %arg6[%c0_11, %c0_12] : memref<1x256xf32, #tpu.memory_space<vmem>>, vector<1x256xf32>
    %14 = vector.broadcast %13 : vector<1x256xf32> to vector<8x256xf32>
    %15 = arith.addf %12, %14 : vector<8x256xf32>
    %16 = arith.truncf %10 : vector<8x256xf32> to vector<8x256xbf16>
    %c0_13 = arith.constant 0 : index
    %c0_14 = arith.constant 0 : index
    %17 = vector.load %arg7[%c0_13, %c0_14] : memref<256x128xbf16, #tpu.memory_space<vmem>>, vector<256x128xbf16>
    %cst_15 = arith.constant dense<0.000000e+00> : vector<8x128xf32>
    %18 = tpu.matmul %16, %17, %cst_15 {dimension_numbers = #tpu.dot_dimension_numbers<[1], [0], [0], [1], [0, 0, 1, 1], [], []>} : vector<8x256xbf16>, vector<256x128xbf16>, vector<8x128xf32> -> vector<8x128xf32>
    %19 = arith.truncf %15 : vector<8x256xf32> to vector<8x256xbf16>
    %c0_16 = arith.constant 0 : index
    %c0_17 = arith.constant 0 : index
    %20 = vector.load %arg8[%c0_16, %c0_17] : memref<256x128xbf16, #tpu.memory_space<vmem>>, vector<256x128xbf16>
    %cst_18 = arith.constant dense<0.000000e+00> : vector<8x128xf32>
    %21 = tpu.matmul %19, %20, %cst_18 {dimension_numbers = #tpu.dot_dimension_numbers<[1], [0], [0], [1], [0, 0, 1, 1], [], []>} : vector<8x256xbf16>, vector<256x128xbf16>, vector<8x128xf32> -> vector<8x128xf32>
    %22 = arith.addf %18, %21 : vector<8x128xf32>
    %c0_19 = arith.constant 0 : index
    %c0_20 = arith.constant 0 : index
    %23 = vector.load %arg9[%c0_19, %c0_20] : memref<1x128xf32, #tpu.memory_space<vmem>>, vector<1x128xf32>
    %24 = vector.broadcast %23 : vector<1x128xf32> to vector<8x128xf32>
    %25 = arith.addf %22, %24 : vector<8x128xf32>
    %c0_21 = arith.constant 0 : index
    %c0_22 = arith.constant 0 : index
    %26 = vector.load %arg10[%c0_21, %c0_22] : memref<8x128xf32, #tpu.memory_space<vmem>>, vector<8x128xf32>
    tpu.vector_store %arg10[%c0_21, %c0_22], %25 {strides = array<i32>} : memref<8x128xf32, #tpu.memory_space<vmem>>, vector<8x128xf32>,
    return
  }
  func.func @transform_0(%arg0: i32) -> (i32, i32) {
    %c0_i32 = arith.constant 0 : i32
    %c0_i32_0 = arith.constant 0 : i32
    return %arg0, %c0_i32 : i32, i32
  }
  func.func @transform_1(%arg0: i32) -> (i32, i32) {
    %c0_i32 = arith.constant 0 : i32
    %c0_i32_0 = arith.constant 0 : i32
    return %arg0, %c0_i32 : i32, i32
  }
  func.func @transform_2(%arg0: i32) -> (i32, i32) {
    %c0_i32 = arith.constant 0 : i32
    %c0_i32_0 = arith.constant 0 : i32
    %c0_i32_1 = arith.constant 0 : i32
    return %c0_i32, %c0_i32_0 : i32, i32
  }
  func.func @transform_3(%arg0: i32) -> (i32, i32) {
    %c0_i32 = arith.constant 0 : i32
    %c0_i32_0 = arith.constant 0 : i32
    %c0_i32_1 = arith.constant 0 : i32
    return %c0_i32, %c0_i32_0 : i32, i32
  }
  func.func @transform_4(%arg0: i32) -> (i32, i32) {
    %c0_i32 = arith.constant 0 : i32
    %c0_i32_0 = arith.constant 0 : i32
    %c0_i32_1 = arith.constant 0 : i32
    return %c0_i32, %c0_i32_0 : i32, i32
  }
  func.func @transform_5(%arg0: i32) -> (i32, i32) {
    %c0_i32 = arith.constant 0 : i32
    %c0_i32_0 = arith.constant 0 : i32
    %c0_i32_1 = arith.constant 0 : i32
    return %c0_i32, %c0_i32_0 : i32, i32
  }
  func.func @transform_6(%arg0: i32) -> (i32, i32) {
    %c0_i32 = arith.constant 0 : i32
    %c0_i32_0 = arith.constant 0 : i32
    %c0_i32_1 = arith.constant 0 : i32
    return %c0_i32, %c0_i32_0 : i32, i32
  }
  func.func @transform_7(%arg0: i32) -> (i32, i32) {
    %c0_i32 = arith.constant 0 : i32
    %c0_i32_0 = arith.constant 0 : i32
    %c0_i32_1 = arith.constant 0 : i32
    return %c0_i32, %c0_i32_0 : i32, i32
  }
  func.func @transform_8(%arg0: i32) -> (i32, i32) {
    %c0_i32 = arith.constant 0 : i32
    %c0_i32_0 = arith.constant 0 : i32
    %c0_i32_1 = arith.constant 0 : i32
    return %c0_i32, %c0_i32_0 : i32, i32
  }
  func.func @transform_9(%arg0: i32) -> (i32, i32) {
    %c0_i32 = arith.constant 0 : i32
    %c0_i32_0 = arith.constant 0 : i32
    return %arg0, %c0_i32 : i32, i32
  }
}

</mosaic_0001>

<llo_original>
// kernel: _combined_forward_impl.1
$region0: #{_combined_forward_impl.1}
  #allocation0 [shape = 'u32[]', space=smem, size = 0x4, offset = 0x4, fixed_abs, tag = 'smem constant byte address 0x4 - core index']
  #allocation1 [shape = 'u32[144,128]{1,0:T(1,128)}', space=vmem, size = 0x12000, scoped, tag = 'internal scratch']
  %s0 = inlined_call_operand.vmem [shape: f32[8,2048], index: 0, kind: input, shape index: {}]
  %s1 = inlined_call_operand.vmem [shape: f32[8,128], index: 1, kind: input, shape index: {}]
  %s2 = inlined_call_operand.hbm [shape: bf16[2048,256], index: 2, kind: input, shape index: {}]
  %s3 = inlined_call_operand.vmem [shape: f32[1,256], index: 3, kind: input, shape index: {}]
  %s4 = inlined_call_operand.vmem [shape: bf16[128,256], index: 4, kind: input, shape index: {}]
  %s5 = inlined_call_operand.vmem [shape: f32[1,256], index: 5, kind: input, shape index: {}]
  %s6 = inlined_call_operand.hbm [shape: bf16[256,128], index: 6, kind: input, shape index: {}]
  %s7 = inlined_call_operand.hbm [shape: bf16[256,128], index: 7, kind: input, shape index: {}]
  %s8 = inlined_call_operand.vmem [shape: f32[1,128], index: 8, kind: input, shape index: {}]
  %s9 = inlined_call_operand.vmem [shape: f32[8,128], index: 9, kind: output, shape index: {}]
  %s10 = sld [smem:[#allocation0]]
  $region58: #{_combined_forward_impl.1} parent=0
    _
  %s12 = ssub.s32 1, %s10
  %s13 = scalar_select 0, %s12, %s10
  $region1: #{_combined_forward_impl.1} parent=0
    #allocation2 [shape = 'u8[1048576]{0}', space=vmem, size = 0x100000, scoped, tag = 'input window, operand 2, single buffered']
    #allocation3 [shape = 's32[1]{0}', space=sflag, size = 0x4, scoped, tag = 'scoped memory for _combined_forward_impl.1']
    #allocation4 [shape = 'u8[65536]{0}', space=vmem, size = 0x10000, scoped, tag = 'input window, operand 6, single buffered']
    #allocation5 [shape = 's32[1]{0}', space=sflag, size = 0x4, scoped, tag = 'scoped memory for _combined_forward_impl.1']
    #allocation6 [shape = 'u8[65536]{0}', space=vmem, size = 0x10000, scoped, tag = 'input window, operand 7, single buffered']
    %14 = vsyncpa [#allocation3], 0
    %15 = vsyncpa [#allocation5], 0
    // Predicated region
    $region2: #{_combined_forward_impl.1} parent=1 // pred_check
      _
    $region3: #{_combined_forward_impl.1} parent=1 // pred_check_branch
      %17 = sbr.rel (0) target = $region5
    $region4: #{_combined_forward_impl.1} parent=1 // pred_region
      _
    $region5: #{_combined_forward_impl.1} parent=1 // pred_fallthru
      _
    // Predicated region
    $region6: #{_combined_forward_impl.1} parent=1 // pred_check
      _
    $region7: #{_combined_forward_impl.1} parent=1 // pred_check_branch
      %19 = sbr.rel (0) target = $region9
    $region8: #{_combined_forward_impl.1} parent=1 // pred_region
      _
    $region9: #{_combined_forward_impl.1} parent=1 // pred_fallthru
      _
    // Predicated region
    $region10: #{_combined_forward_impl.1} parent=1 // pred_check
      _
    $region11: #{_combined_forward_impl.1} parent=1 // pred_check_branch
      %21 = sbr.rel (0) target = $region13
    $region12: #{_combined_forward_impl.1} parent=1 // pred_region
      %s23 = ssub.s32 32768, 32768
      %24 = vsyncadd [#allocation3], %s23
      %s25 = sshll.u32 [#allocation2], 4
      %s26 = int_to_ptr.vmem [resolvable:$true] %s25
      %31 = dma.hbm_to_vmem [thread:$0]  %s2, 32768, %s26, [#allocation3], 128, 128, 8
    $region13: #{_combined_forward_impl.1} parent=1 // pred_fallthru
      _
    // Predicated region
    $region14: #{_combined_forward_impl.1} parent=1 // pred_check
      _
    $region15: #{_combined_forward_impl.1} parent=1 // pred_check_branch
      %33 = sbr.rel (0) target = $region17
    $region16: #{_combined_forward_impl.1} parent=1 // pred_region
      _
    $region17: #{_combined_forward_impl.1} parent=1 // pred_fallthru
      _
    // Predicated region
    $region18: #{_combined_forward_impl.1} parent=1 // pred_check
      _
    $region19: #{_combined_forward_impl.1} parent=1 // pred_check_branch
      %35 = sbr.rel (0) target = $region21
    $region20: #{_combined_forward_impl.1} parent=1 // pred_region
      _
    $region21: #{_combined_forward_impl.1} parent=1 // pred_fallthru
      _
    // Predicated region
    $region22: #{_combined_forward_impl.1} parent=1 // pred_check
      _
    $region23: #{_combined_forward_impl.1} parent=1 // pred_check_branch
      %37 = sbr.rel (0) target = $region25
    $region24: #{_combined_forward_impl.1} parent=1 // pred_region
      _
    $region25: #{_combined_forward_impl.1} parent=1 // pred_fallthru
      _
    // Predicated region
    $region26: #{_combined_forward_impl.1} parent=1 // pred_check
      _
    $region27: #{_combined_forward_impl.1} parent=1 // pred_check_branch
      %39 = sbr.rel (0) target = $region29
    $region28: #{_combined_forward_impl.1} parent=1 // pred_region
      %s41 = ssub.s32 2048, 2048
      %42 = vsyncadd [#allocation5], %s41
      %s43 = sshll.u32 [#allocation4], 4
      %s44 = int_to_ptr.vmem [resolvable:$true] %s43
      %49 = dma.hbm_to_vmem [thread:$0]  %s6, 2048, %s44, [#allocation5], 64, 64, 4
    $region29: #{_combined_forward_impl.1} parent=1 // pred_fallthru
      _
    // Predicated region
    $region30: #{_combined_forward_impl.1} parent=1 // pred_check
      _
    $region31: #{_combined_forward_impl.1} parent=1 // pred_check_branch
      %51 = sbr.rel (0) target = $region33
    $region32: #{_combined_forward_impl.1} parent=1 // pred_region
      %s53 = ssub.s32 2048, 2048
      %54 = vsyncadd [#allocation5], %s53
      %s55 = sshll.u32 [#allocation6], 4
      %s56 = int_to_ptr.vmem [resolvable:$true] %s55
      %61 = dma.hbm_to_vmem [thread:$0]  %s7, 2048, %s56, [#allocation5], 64, 64, 4
    $region33: #{_combined_forward_impl.1} parent=1 // pred_fallthru
      _
    // Predicated region
    $region34: #{_combined_forward_impl.1} parent=1 // pred_check
      _
    $region35: #{_combined_forward_impl.1} parent=1 // pred_check_branch
      %63 = sbr.rel (0) target = $region37
    $region36: #{_combined_forward_impl.1} parent=1 // pred_region
      _
    $region37: #{_combined_forward_impl.1} parent=1 // pred_fallthru
      _
    // Predicated region
    $region38: #{_combined_forward_impl.1} parent=1 // pred_check
      _
    $region39: #{_combined_forward_impl.1} parent=1 // pred_check_branch
      %65 = sbr.rel (0) target = $region41
    $region40: #{_combined_forward_impl.1} parent=1 // pred_region
      %66 = dma.done [#allocation3], 32768
    $region41: #{_combined_forward_impl.1} parent=1 // pred_fallthru
      _
    // Predicated region
    $region42: #{_combined_forward_impl.1} parent=1 // pred_check
      _
    $region43: #{_combined_forward_impl.1} parent=1 // pred_check_branch
      %68 = sbr.rel (0) target = $region45
    $region44: #{_combined_forward_impl.1} parent=1 // pred_region
      %69 = dma.done [#allocation5], 2048
    $region45: #{_combined_forward_impl.1} parent=1 // pred_fallthru
      _
    // Predicated region
    $region46: #{_combined_forward_impl.1} parent=1 // pred_check
      _
    $region47: #{_combined_forward_impl.1} parent=1 // pred_check_branch
      %71 = sbr.rel (0) target = $region49
    $region48: #{_combined_forward_impl.1} parent=1 // pred_region
      %72 = dma.done [#allocation5], 2048
    $region49: #{_combined_forward_impl.1} parent=1 // pred_fallthru
      _
    %v74 = vld [vmem:[%s0] sm:$0xff]
    %v75 = vld [vmem:[%s0 + $0x8] sm:$0xff]
    %v76 = vld [vmem:[%s0 + $0x10] sm:$0xff]
    %v77 = vld [vmem:[%s0 + $0x18] sm:$0xff]
    %v78 = vld [vmem:[%s0 + $0x20] sm:$0xff]
    %v79 = vld [vmem:[%s0 + $0x28] sm:$0xff]
    %v80 = vld [vmem:[%s0 + $0x30] sm:$0xff]
    %v81 = vld [vmem:[%s0 + $0x38] sm:$0xff]
    %v82 = vld [vmem:[%s0 + $0x40] sm:$0xff]
    %v83 = vld [vmem:[%s0 + $0x48] sm:$0xff]
    %v84 = vld [vmem:[%s0 + $0x50] sm:$0xff]
    %v85 = vld [vmem:[%s0 + $0x58] sm:$0xff]
    %v86 = vld [vmem:[%s0 + $0x60] sm:$0xff]
    %v87 = vld [vmem:[%s0 + $0x68] sm:$0xff]
    %v88 = vld [vmem:[%s0 + $0x70] sm:$0xff]
    %v89 = vld [vmem:[%s0 + $0x78] sm:$0xff]
    %v90 = vld [vmem:[%s1] sm:$0xff]
    %v91 = vpack.c.bf16 %v74, %v74
    %v92 = vpack.c.bf16 %v75, %v75
    %v93 = vpack.c.bf16 %v76, %v76
    %v94 = vpack.c.bf16 %v77, %v77
    %v95 = vpack.c.bf16 %v78, %v78
    %v96 = vpack.c.bf16 %v79, %v79
    %v97 = vpack.c.bf16 %v80, %v80
    %v98 = vpack.c.bf16 %v81, %v81
    %v99 = vpack.c.bf16 %v82, %v82
    %v100 = vpack.c.bf16 %v83, %v83
    %v101 = vpack.c.bf16 %v84, %v84
    %v102 = vpack.c.bf16 %v85, %v85
    %v103 = vpack.c.bf16 %v86, %v86
    %v104 = vpack.c.bf16 %v87, %v87
    %v105 = vpack.c.bf16 %v88, %v88
    %v106 = vpack.c.bf16 %v89, %v89
    %v107 = vpack.c.bf16 %v90, %v90
    %v108 = vld [vmem:[#allocation2] sm:$0xff]
    %v109 = vld [vmem:[#allocation2 + $0x8] sm:$0xff]
    %v110 = vld [vmem:[#allocation2 + $0x10] sm:$0xff]
    %v111 = vld [vmem:[#allocation2 + $0x18] sm:$0xff]
    %v112 = vld [vmem:[#allocation2 + $0x20] sm:$0xff]
    %v113 = vld [vmem:[#allocation2 + $0x28] sm:$0xff]
    %v114 = vld [vmem:[#allocation2 + $0x30] sm:$0xff]
    %v115 = vld [vmem:[#allocation2 + $0x38] sm:$0xff]
    %v116 = vld [vmem:[#allocation2 + $0x40] sm:$0xff]
    %v117 = vld [vmem:[#allocation2 + $0x48] sm:$0xff]
    %v118 = vld [vmem:[#allocation2 + $0x50] sm:$0xff]
    %v119 = vld [vmem:[#allocation2 + $0x58] sm:$0xff]
    %v120 = vld [vmem:[#allocation2 + $0x60] sm:$0xff]
    %v121 = vld [vmem:[#allocation2 + $0x68] sm:$0xff]
    %v122 = vld [vmem:[#allocation2 + $0x70] sm:$0xff]
    %v123 = vld [vmem:[#allocation2 + $0x78] sm:$0xff]
    %v124 = vld [vmem:[#allocation2 + $0x80] sm:$0xff]
    %v125 = vld [vmem:[#allocation2 + $0x88] sm:$0xff]
    %v126 = vld [vmem:[#allocation2 + $0x90] sm:$0xff]
    %v127 = vld [vmem:[#allocation2 + $0x98] sm:$0xff]
    %v128 = vld [vmem:[#allocation2 + $0xa0] sm:$0xff]
    %v129 = vld [vmem:[#allocation2 + $0xa8] sm:$0xff]
    %v130 = vld [vmem:[#allocation2 + $0xb0] sm:$0xff]
    %v131 = vld [vmem:[#allocation2 + $0xb8] sm:$0xff]
    %v132 = vld [vmem:[#allocation2 + $0xc0] sm:$0xff]
    %v133 = vld [vmem:[#allocation2 + $0xc8] sm:$0xff]
    %v134 = vld [vmem:[#allocation2 + $0xd0] sm:$0xff]
    %v135 = vld [vmem:[#allocation2 + $0xd8] sm:$0xff]
    %v136 = vld [vmem:[#allocation2 + $0xe0] sm:$0xff]
    %v137 = vld [vmem:[#allocation2 + $0xe8] sm:$0xff]
    %v138 = vld [vmem:[#allocation2 + $0xf0] sm:$0xff]
    %v139 = vld [vmem:[#allocation2 + $0xf8] sm:$0xff]
    %v140 = vld [vmem:[#allocation2 + $0x100] sm:$0xff]
    %v141 = vld [vmem:[#allocation2 + $0x108] sm:$0xff]
    %v142 = vld [vmem:[#allocation2 + $0x110] sm:$0xff]
    %v143 = vld [vmem:[#allocation2 + $0x118] sm:$0xff]
    %v144 = vld [vmem:[#allocation2 + $0x120] sm:$0xff]
    %v145 = vld [vmem:[#allocation2 + $0x128] sm:$0xff]
    %v146 = vld [vmem:[#allocation2 + $0x130] sm:$0xff]
    %v147 = vld [vmem:[#allocation2 + $0x138] sm:$0xff]
    %v148 = vld [vmem:[#allocation2 + $0x140] sm:$0xff]
    %v149 = vld [vmem:[#allocation2 + $0x148] sm:$0xff]
    %v150 = vld [vmem:[#allocation2 + $0x150] sm:$0xff]
    %v151 = vld [vmem:[#allocation2 + $0x158] sm:$0xff]
    %v152 = vld [vmem:[#allocation2 + $0x160] sm:$0xff]
    %v153 = vld [vmem:[#allocation2 + $0x168] sm:$0xff]
    %v154 = vld [vmem:[#allocation2 + $0x170] sm:$0xff]
    %v155 = vld [vmem:[#allocation2 + $0x178] sm:$0xff]
    %v156 = vld [vmem:[#allocation2 + $0x180] sm:$0xff]
    %v157 = vld [vmem:[#allocation2 + $0x188] sm:$0xff]
    %v158 = vld [vmem:[#allocation2 + $0x190] sm:$0xff]
    %v159 = vld [vmem:[#allocation2 + $0x198] sm:$0xff]
    %v160 = vld [vmem:[#allocation2 + $0x1a0] sm:$0xff]
    %v161 = vld [vmem:[#allocation2 + $0x1a8] sm:$0xff]
    %v162 = vld [vmem:[#allocation2 + $0x1b0] sm:$0xff]
    %v163 = vld [vmem:[#allocation2 + $0x1b8] sm:$0xff]
    %v164 = vld [vmem:[#allocation2 + $0x1c0] sm:$0xff]
    %v165 = vld [vmem:[#allocation2 + $0x1c8] sm:$0xff]
    %v166 = vld [vmem:[#allocation2 + $0x1d0] sm:$0xff]
    %v167 = vld [vmem:[#allocation2 + $0x1d8] sm:$0xff]
    %v168 = vld [vmem:[#allocation2 + $0x1e0] sm:$0xff]
    %v169 = vld [vmem:[#allocation2 + $0x1e8] sm:$0xff]
    %v170 = vld [vmem:[#allocation2 + $0x1f0] sm:$0xff]
    %v171 = vld [vmem:[#allocation2 + $0x1f8] sm:$0xff]
    %v172 = vld [vmem:[#allocation2 + $0x200] sm:$0xff]
    %v173 = vld [vmem:[#allocation2 + $0x208] sm:$0xff]
    %v174 = vld [vmem:[#allocation2 + $0x210] sm:$0xff]
    %v175 = vld [vmem:[#allocation2 + $0x218] sm:$0xff]
    %v176 = vld [vmem:[#allocation2 + $0x220] sm:$0xff]
    %v177 = vld [vmem:[#allocation2 + $0x228] sm:$0xff]
    %v178 = vld [vmem:[#allocation2 + $0x230] sm:$0xff]
    %v179 = vld [vmem:[#allocation2 + $0x238] sm:$0xff]
    %v180 = vld [vmem:[#allocation2 + $0x240] sm:$0xff]
    %v181 = vld [vmem:[#allocation2 + $0x248] sm:$0xff]
    %v182 = vld [vmem:[#allocation2 + $0x250] sm:$0xff]
    %v183 = vld [vmem:[#allocation2 + $0x258] sm:$0xff]
    %v184 = vld [vmem:[#allocation2 + $0x260] sm:$0xff]
    %v185 = vld [vmem:[#allocation2 + $0x268] sm:$0xff]
    %v186 = vld [vmem:[#allocation2 + $0x270] sm:$0xff]
    %v187 = vld [vmem:[#allocation2 + $0x278] sm:$0xff]
    %v188 = vld [vmem:[#allocation2 + $0x280] sm:$0xff]
    %v189 = vld [vmem:[#allocation2 + $0x288] sm:$0xff]
    %v190 = vld [vmem:[#allocation2 + $0x290] sm:$0xff]
    %v191 = vld [vmem:[#allocation2 + $0x298] sm:$0xff]
    %v192 = vld [vmem:[#allocation2 + $0x2a0] sm:$0xff]
    %v193 = vld [vmem:[#allocation2 + $0x2a8] sm:$0xff]
    %v194 = vld [vmem:[#allocation2 + $0x2b0] sm:$0xff]
    %v195 = vld [vmem:[#allocation2 + $0x2b8] sm:$0xff]
    %v196 = vld [vmem:[#allocation2 + $0x2c0] sm:$0xff]
    %v197 = vld [vmem:[#allocation2 + $0x2c8] sm:$0xff]
    %v198 = vld [vmem:[#allocation2 + $0x2d0] sm:$0xff]
    %v199 = vld [vmem:[#allocation2 + $0x2d8] sm:$0xff]
    %v200 = vld [vmem:[#allocation2 + $0x2e0] sm:$0xff]
    %v201 = vld [vmem:[#allocation2 + $0x2e8] sm:$0xff]
    %v202 = vld [vmem:[#allocation2 + $0x2f0] sm:$0xff]
    %v203 = vld [vmem:[#allocation2 + $0x2f8] sm:$0xff]
    %v204 = vld [vmem:[#allocation2 + $0x300] sm:$0xff]
    %v205 = vld [vmem:[#allocation2 + $0x308] sm:$0xff]
    %v206 = vld [vmem:[#allocation2 + $0x310] sm:$0xff]
    %v207 = vld [vmem:[#allocation2 + $0x318] sm:$0xff]
    %v208 = vld [vmem:[#allocation2 + $0x320] sm:$0xff]
    %v209 = vld [vmem:[#allocation2 + $0x328] sm:$0xff]
    %v210 = vld [vmem:[#allocation2 + $0x330] sm:$0xff]
    %v211 = vld [vmem:[#allocation2 + $0x338] sm:$0xff]
    %v212 = vld [vmem:[#allocation2 + $0x340] sm:$0xff]
    %v213 = vld [vmem:[#allocation2 + $0x348] sm:$0xff]
    %v214 = vld [vmem:[#allocation2 + $0x350] sm:$0xff]
    %v215 = vld [vmem:[#allocation2 + $0x358] sm:$0xff]
    %v216 = vld [vmem:[#allocation2 + $0x360] sm:$0xff]
    %v217 = vld [vmem:[#allocation2 + $0x368] sm:$0xff]
    %v218 = vld [vmem:[#allocation2 + $0x370] sm:$0xff]
    %v219 = vld [vmem:[#allocation2 + $0x378] sm:$0xff]
    %v220 = vld [vmem:[#allocation2 + $0x380] sm:$0xff]
    %v221 = vld [vmem:[#allocation2 + $0x388] sm:$0xff]
    %v222 = vld [vmem:[#allocation2 + $0x390] sm:$0xff]
    %v223 = vld [vmem:[#allocation2 + $0x398] sm:$0xff]
    %v224 = vld [vmem:[#allocation2 + $0x3a0] sm:$0xff]
    %v225 = vld [vmem:[#allocation2 + $0x3a8] sm:$0xff]
    %v226 = vld [vmem:[#allocation2 + $0x3b0] sm:$0xff]
    %v227 = vld [vmem:[#allocation2 + $0x3b8] sm:$0xff]
    %v228 = vld [vmem:[#allocation2 + $0x3c0] sm:$0xff]
    %v229 = vld [vmem:[#allocation2 + $0x3c8] sm:$0xff]
    %v230 = vld [vmem:[#allocation2 + $0x3d0] sm:$0xff]
    %v231 = vld [vmem:[#allocation2 + $0x3d8] sm:$0xff]
    %v232 = vld [vmem:[#allocation2 + $0x3e0] sm:$0xff]
    %v233 = vld [vmem:[#allocation2 + $0x3e8] sm:$0xff]
    %v234 = vld [vmem:[#allocation2 + $0x3f0] sm:$0xff]
    %v235 = vld [vmem:[#allocation2 + $0x3f8] sm:$0xff]
    %v236 = vld [vmem:[#allocation2 + $0x400] sm:$0xff]
    %v237 = vld [vmem:[#allocation2 + $0x408] sm:$0xff]
    %v238 = vld [vmem:[#allocation2 + $0x410] sm:$0xff]
    %v239 = vld [vmem:[#allocation2 + $0x418] sm:$0xff]
    %v240 = vld [vmem:[#allocation2 + $0x420] sm:$0xff]
    %v241 = vld [vmem:[#allocation2 + $0x428] sm:$0xff]
    %v242 = vld [vmem:[#allocation2 + $0x430] sm:$0xff]
    %v243 = vld [vmem:[#allocation2 + $0x438] sm:$0xff]
    %v244 = vld [vmem:[#allocation2 + $0x440] sm:$0xff]
    %v245 = vld [vmem:[#allocation2 + $0x448] sm:$0xff]
    %v246 = vld [vmem:[#allocation2 + $0x450] sm:$0xff]
    %v247 = vld [vmem:[#allocation2 + $0x458] sm:$0xff]
    %v248 = vld [vmem:[#allocation2 + $0x460] sm:$0xff]
    %v249 = vld [vmem:[#allocation2 + $0x468] sm:$0xff]
    %v250 = vld [vmem:[#allocation2 + $0x470] sm:$0xff]
    %v251 = vld [vmem:[#allocation2 + $0x478] sm:$0xff]
    %v252 = vld [vmem:[#allocation2 + $0x480] sm:$0xff]
    %v253 = vld [vmem:[#allocation2 + $0x488] sm:$0xff]
    %v254 = vld [vmem:[#allocation2 + $0x490] sm:$0xff]
    %v255 = vld [vmem:[#allocation2 + $0x498] sm:$0xff]
    %v256 = vld [vmem:[#allocation2 + $0x4a0] sm:$0xff]
    %v257 = vld [vmem:[#allocation2 + $0x4a8] sm:$0xff]
    %v258 = vld [vmem:[#allocation2 + $0x4b0] sm:$0xff]
    %v259 = vld [vmem:[#allocation2 + $0x4b8] sm:$0xff]
    %v260 = vld [vmem:[#allocation2 + $0x4c0] sm:$0xff]
    %v261 = vld [vmem:[#allocation2 + $0x4c8] sm:$0xff]
    %v262 = vld [vmem:[#allocation2 + $0x4d0] sm:$0xff]
    %v263 = vld [vmem:[#allocation2 + $0x4d8] sm:$0xff]
    %v264 = vld [vmem:[#allocation2 + $0x4e0] sm:$0xff]
    %v265 = vld [vmem:[#allocation2 + $0x4e8] sm:$0xff]
    %v266 = vld [vmem:[#allocation2 + $0x4f0] sm:$0xff]
    %v267 = vld [vmem:[#allocation2 + $0x4f8] sm:$0xff]
    %v268 = vld [vmem:[#allocation2 + $0x500] sm:$0xff]
    %v269 = vld [vmem:[#allocation2 + $0x508] sm:$0xff]
    %v270 = vld [vmem:[#allocation2 + $0x510] sm:$0xff]
    %v271 = vld [vmem:[#allocation2 + $0x518] sm:$0xff]
    %v272 = vld [vmem:[#allocation2 + $0x520] sm:$0xff]
    %v273 = vld [vmem:[#allocation2 + $0x528] sm:$0xff]
    %v274 = vld [vmem:[#allocation2 + $0x530] sm:$0xff]
    %v275 = vld [vmem:[#allocation2 + $0x538] sm:$0xff]
    %v276 = vld [vmem:[#allocation2 + $0x540] sm:$0xff]
    %v277 = vld [vmem:[#allocation2 + $0x548] sm:$0xff]
    %v278 = vld [vmem:[#allocation2 + $0x550] sm:$0xff]
    %v279 = vld [vmem:[#allocation2 + $0x558] sm:$0xff]
    %v280 = vld [vmem:[#allocation2 + $0x560] sm:$0xff]
    %v281 = vld [vmem:[#allocation2 + $0x568] sm:$0xff]
    %v282 = vld [vmem:[#allocation2 + $0x570] sm:$0xff]
    %v283 = vld [vmem:[#allocation2 + $0x578] sm:$0xff]
    %v284 = vld [vmem:[#allocation2 + $0x580] sm:$0xff]
    %v285 = vld [vmem:[#allocation2 + $0x588] sm:$0xff]
    %v286 = vld [vmem:[#allocation2 + $0x590] sm:$0xff]
    %v287 = vld [vmem:[#allocation2 + $0x598] sm:$0xff]
    %v288 = vld [vmem:[#allocation2 + $0x5a0] sm:$0xff]
    %v289 = vld [vmem:[#allocation2 + $0x5a8] sm:$0xff]
    %v290 = vld [vmem:[#allocation2 + $0x5b0] sm:$0xff]
    %v291 = vld [vmem:[#allocation2 + $0x5b8] sm:$0xff]
    %v292 = vld [vmem:[#allocation2 + $0x5c0] sm:$0xff]
    %v293 = vld [vmem:[#allocation2 + $0x5c8] sm:$0xff]
    %v294 = vld [vmem:[#allocation2 + $0x5d0] sm:$0xff]
    %v295 = vld [vmem:[#allocation2 + $0x5d8] sm:$0xff]
    %v296 = vld [vmem:[#allocation2 + $0x5e0] sm:$0xff]
    %v297 = vld [vmem:[#allocation2 + $0x5e8] sm:$0xff]
    %v298 = vld [vmem:[#allocation2 + $0x5f0] sm:$0xff]
    %v299 = vld [vmem:[#allocation2 + $0x5f8] sm:$0xff]
    %v300 = vld [vmem:[#allocation2 + $0x600] sm:$0xff]
    %v301 = vld [vmem:[#allocation2 + $0x608] sm:$0xff]
    %v302 = vld [vmem:[#allocation2 + $0x610] sm:$0xff]
    %v303 = vld [vmem:[#allocation2 + $0x618] sm:$0xff]
    %v304 = vld [vmem:[#allocation2 + $0x620] sm:$0xff]
    %v305 = vld [vmem:[#allocation2 + $0x628] sm:$0xff]
    %v306 = vld [vmem:[#allocation2 + $0x630] sm:$0xff]
    %v307 = vld [vmem:[#allocation2 + $0x638] sm:$0xff]
    %v308 = vld [vmem:[#allocation2 + $0x640] sm:$0xff]
    %v309 = vld [vmem:[#allocation2 + $0x648] sm:$0xff]
    %v310 = vld [vmem:[#allocation2 + $0x650] sm:$0xff]
    %v311 = vld [vmem:[#allocation2 + $0x658] sm:$0xff]
    %v312 = vld [vmem:[#allocation2 + $0x660] sm:$0xff]
    %v313 = vld [vmem:[#allocation2 + $0x668] sm:$0xff]
    %v314 = vld [vmem:[#allocation2 + $0x670] sm:$0xff]
    %v315 = vld [vmem:[#allocation2 + $0x678] sm:$0xff]
    %v316 = vld [vmem:[#allocation2 + $0x680] sm:$0xff]
    %v317 = vld [vmem:[#allocation2 + $0x688] sm:$0xff]
    %v318 = vld [vmem:[#allocation2 + $0x690] sm:$0xff]
    %v319 = vld [vmem:[#allocation2 + $0x698] sm:$0xff]
    %v320 = vld [vmem:[#allocation2 + $0x6a0] sm:$0xff]
    %v321 = vld [vmem:[#allocation2 + $0x6a8] sm:$0xff]
    %v322 = vld [vmem:[#allocation2 + $0x6b0] sm:$0xff]
    %v323 = vld [vmem:[#allocation2 + $0x6b8] sm:$0xff]
    %v324 = vld [vmem:[#allocation2 + $0x6c0] sm:$0xff]
    %v325 = vld [vmem:[#allocation2 + $0x6c8] sm:$0xff]
    %v326 = vld [vmem:[#allocation2 + $0x6d0] sm:$0xff]
    %v327 = vld [vmem:[#allocation2 + $0x6d8] sm:$0xff]
    %v328 = vld [vmem:[#allocation2 + $0x6e0] sm:$0xff]
    %v329 = vld [vmem:[#allocation2 + $0x6e8] sm:$0xff]
    %v330 = vld [vmem:[#allocation2 + $0x6f0] sm:$0xff]
    %v331 = vld [vmem:[#allocation2 + $0x6f8] sm:$0xff]
    %v332 = vld [vmem:[#allocation2 + $0x700] sm:$0xff]
    %v333 = vld [vmem:[#allocation2 + $0x708] sm:$0xff]
    %v334 = vld [vmem:[#allocation2 + $0x710] sm:$0xff]
    %v335 = vld [vmem:[#allocation2 + $0x718] sm:$0xff]
    %v336 = vld [vmem:[#allocation2 + $0x720] sm:$0xff]
    %v337 = vld [vmem:[#allocation2 + $0x728] sm:$0xff]
    %v338 = vld [vmem:[#allocation2 + $0x730] sm:$0xff]
    %v339 = vld [vmem:[#allocation2 + $0x738] sm:$0xff]
    %v340 = vld [vmem:[#allocation2 + $0x740] sm:$0xff]
    %v341 = vld [vmem:[#allocation2 + $0x748] sm:$0xff]
    %v342 = vld [vmem:[#allocation2 + $0x750] sm:$0xff]
    %v343 = vld [vmem:[#allocation2 + $0x758] sm:$0xff]
    %v344 = vld [vmem:[#allocation2 + $0x760] sm:$0xff]
    %v345 = vld [vmem:[#allocation2 + $0x768] sm:$0xff]
    %v346 = vld [vmem:[#allocation2 + $0x770] sm:$0xff]
    %v347 = vld [vmem:[#allocation2 + $0x778] sm:$0xff]
    %v348 = vld [vmem:[#allocation2 + $0x780] sm:$0xff]
    %v349 = vld [vmem:[#allocation2 + $0x788] sm:$0xff]
    %v350 = vld [vmem:[#allocation2 + $0x790] sm:$0xff]
    %v351 = vld [vmem:[#allocation2 + $0x798] sm:$0xff]
    %v352 = vld [vmem:[#allocation2 + $0x7a0] sm:$0xff]
    %v353 = vld [vmem:[#allocation2 + $0x7a8] sm:$0xff]
    %v354 = vld [vmem:[#allocation2 + $0x7b0] sm:$0xff]
    %v355 = vld [vmem:[#allocation2 + $0x7b8] sm:$0xff]
    %v356 = vld [vmem:[#allocation2 + $0x7c0] sm:$0xff]
    %v357 = vld [vmem:[#allocation2 + $0x7c8] sm:$0xff]
    %v358 = vld [vmem:[#allocation2 + $0x7d0] sm:$0xff]
    %v359 = vld [vmem:[#allocation2 + $0x7d8] sm:$0xff]
    %v360 = vld [vmem:[#allocation2 + $0x7e0] sm:$0xff]
    %v361 = vld [vmem:[#allocation2 + $0x7e8] sm:$0xff]
    %v362 = vld [vmem:[#allocation2 + $0x7f0] sm:$0xff]
    %v363 = vld [vmem:[#allocation2 + $0x7f8] sm:$0xff]
    %v364 = vld [vmem:[%s3] sm:$0x3]
    %v366 = vlaneseq
    %v367 = vshrl.u32 %v366, 7
    %v368 = vsub.s32 0, %v367
    %v369 = vrot.slane %v364, %v368
    %v370 = vlaneseq
    %v371 = vshrl.u32 %v370, 7
    %v372 = vsub.s32 1, %v371
    %v373 = vrot.slane %v364, %v372
    %v632 = vunpack.c.l.b16 %v108
    %v633 = vunpack.c.h.b16 %v108
    %v634 = vunpack.c.l.b16 %v109
    %v635 = vunpack.c.h.b16 %v109
    %v636 = vunpack.c.l.b16 %v110
    %v637 = vunpack.c.h.b16 %v110
    %v638 = vunpack.c.l.b16 %v111
    %v639 = vunpack.c.h.b16 %v111
    %v640 = vunpack.c.l.b16 %v112
    %v641 = vunpack.c.h.b16 %v112
    %v642 = vunpack.c.l.b16 %v113
    %v643 = vunpack.c.h.b16 %v113
    %v644 = vunpack.c.l.b16 %v114
    %v645 = vunpack.c.h.b16 %v114
    %v646 = vunpack.c.l.b16 %v115
    %v647 = vunpack.c.h.b16 %v115
    %v648 = vunpack.c.l.b16 %v116
    %v649 = vunpack.c.h.b16 %v116
    %v650 = vunpack.c.l.b16 %v117
    %v651 = vunpack.c.h.b16 %v117
    %v652 = vunpack.c.l.b16 %v118
    %v653 = vunpack.c.h.b16 %v118
    %v654 = vunpack.c.l.b16 %v119
    %v655 = vunpack.c.h.b16 %v119
    %v656 = vunpack.c.l.b16 %v120
    %v657 = vunpack.c.h.b16 %v120
    %v658 = vunpack.c.l.b16 %v121
    %v659 = vunpack.c.h.b16 %v121
    %v660 = vunpack.c.l.b16 %v122
    %v661 = vunpack.c.h.b16 %v122
    %v662 = vunpack.c.l.b16 %v123
    %v663 = vunpack.c.h.b16 %v123
    %v664 = vunpack.c.l.b16 %v124
    %v665 = vunpack.c.h.b16 %v124
    %v666 = vunpack.c.l.b16 %v125
    %v667 = vunpack.c.h.b16 %v125
    %v668 = vunpack.c.l.b16 %v126
    %v669 = vunpack.c.h.b16 %v126
    %v670 = vunpack.c.l.b16 %v127
    %v671 = vunpack.c.h.b16 %v127
    %v672 = vunpack.c.l.b16 %v128
    %v673 = vunpack.c.h.b16 %v128
    %v674 = vunpack.c.l.b16 %v129
    %v675 = vunpack.c.h.b16 %v129
    %v676 = vunpack.c.l.b16 %v130
    %v677 = vunpack.c.h.b16 %v130
    %v678 = vunpack.c.l.b16 %v131
    %v679 = vunpack.c.h.b16 %v131
    %v680 = vunpack.c.l.b16 %v132
    %v681 = vunpack.c.h.b16 %v132
    %v682 = vunpack.c.l.b16 %v133
    %v683 = vunpack.c.h.b16 %v133
    %v684 = vunpack.c.l.b16 %v134
    %v685 = vunpack.c.h.b16 %v134
    %v686 = vunpack.c.l.b16 %v135
    %v687 = vunpack.c.h.b16 %v135
    %v688 = vunpack.c.l.b16 %v136
    %v689 = vunpack.c.h.b16 %v136
    %v690 = vunpack.c.l.b16 %v137
    %v691 = vunpack.c.h.b16 %v137
    %v692 = vunpack.c.l.b16 %v138
    %v693 = vunpack.c.h.b16 %v138
    %v694 = vunpack.c.l.b16 %v139
    %v695 = vunpack.c.h.b16 %v139
    %v696 = vunpack.c.l.b16 %v140
    %v697 = vunpack.c.h.b16 %v140
    %v698 = vunpack.c.l.b16 %v141
    %v699 = vunpack.c.h.b16 %v141
    %v700 = vunpack.c.l.b16 %v142
    %v701 = vunpack.c.h.b16 %v142
    %v702 = vunpack.c.l.b16 %v143
    %v703 = vunpack.c.h.b16 %v143
    %v704 = vunpack.c.l.b16 %v144
    %v705 = vunpack.c.h.b16 %v144
    %v706 = vunpack.c.l.b16 %v145
    %v707 = vunpack.c.h.b16 %v145
    %v708 = vunpack.c.l.b16 %v146
    %v709 = vunpack.c.h.b16 %v146
    %v710 = vunpack.c.l.b16 %v147
    %v711 = vunpack.c.h.b16 %v147
    %v712 = vunpack.c.l.b16 %v148
    %v713 = vunpack.c.h.b16 %v148
    %v714 = vunpack.c.l.b16 %v149
    %v715 = vunpack.c.h.b16 %v149
    %v716 = vunpack.c.l.b16 %v150
    %v717 = vunpack.c.h.b16 %v150
    %v718 = vunpack.c.l.b16 %v151
    %v719 = vunpack.c.h.b16 %v151
    %v720 = vunpack.c.l.b16 %v152
    %v721 = vunpack.c.h.b16 %v152
    %v722 = vunpack.c.l.b16 %v153
    %v723 = vunpack.c.h.b16 %v153
    %v724 = vunpack.c.l.b16 %v154
    %v725 = vunpack.c.h.b16 %v154
    %v726 = vunpack.c.l.b16 %v155
    %v727 = vunpack.c.h.b16 %v155
    %v728 = vunpack.c.l.b16 %v156
    %v729 = vunpack.c.h.b16 %v156
    %v730 = vunpack.c.l.b16 %v157
    %v731 = vunpack.c.h.b16 %v157
    %v732 = vunpack.c.l.b16 %v158
    %v733 = vunpack.c.h.b16 %v158
    %v734 = vunpack.c.l.b16 %v159
    %v735 = vunpack.c.h.b16 %v159
    %v736 = vunpack.c.l.b16 %v160
    %v737 = vunpack.c.h.b16 %v160
    %v738 = vunpack.c.l.b16 %v161
    %v739 = vunpack.c.h.b16 %v161
    %v740 = vunpack.c.l.b16 %v162
    %v741 = vunpack.c.h.b16 %v162
    %v742 = vunpack.c.l.b16 %v163
    %v743 = vunpack.c.h.b16 %v163
    %v744 = vunpack.c.l.b16 %v164
    %v745 = vunpack.c.h.b16 %v164
    %v746 = vunpack.c.l.b16 %v165
    %v747 = vunpack.c.h.b16 %v165
    %v748 = vunpack.c.l.b16 %v166
    %v749 = vunpack.c.h.b16 %v166
    %v750 = vunpack.c.l.b16 %v167
    %v751 = vunpack.c.h.b16 %v167
    %v752 = vunpack.c.l.b16 %v168
    %v753 = vunpack.c.h.b16 %v168
    %v754 = vunpack.c.l.b16 %v169
    %v755 = vunpack.c.h.b16 %v169
    %v756 = vunpack.c.l.b16 %v170
    %v757 = vunpack.c.h.b16 %v170
    %v758 = vunpack.c.l.b16 %v171
    %v759 = vunpack.c.h.b16 %v171
    %v760 = vunpack.c.l.b16 %v172
    %v761 = vunpack.c.h.b16 %v172
    %v762 = vunpack.c.l.b16 %v173
    %v763 = vunpack.c.h.b16 %v173
    %v764 = vunpack.c.l.b16 %v174
    %v765 = vunpack.c.h.b16 %v174
    %v766 = vunpack.c.l.b16 %v175
    %v767 = vunpack.c.h.b16 %v175
    %v768 = vunpack.c.l.b16 %v176
    %v769 = vunpack.c.h.b16 %v176
    %v770 = vunpack.c.l.b16 %v177
    %v771 = vunpack.c.h.b16 %v177
    %v772 = vunpack.c.l.b16 %v178
    %v773 = vunpack.c.h.b16 %v178
    %v774 = vunpack.c.l.b16 %v179
    %v775 = vunpack.c.h.b16 %v179
    %v776 = vunpack.c.l.b16 %v180
    %v777 = vunpack.c.h.b16 %v180
    %v778 = vunpack.c.l.b16 %v181
    %v779 = vunpack.c.h.b16 %v181
    %v780 = vunpack.c.l.b16 %v182
    %v781 = vunpack.c.h.b16 %v182
    %v782 = vunpack.c.l.b16 %v183
    %v783 = vunpack.c.h.b16 %v183
    %v784 = vunpack.c.l.b16 %v184
    %v785 = vunpack.c.h.b16 %v184
    %v786 = vunpack.c.l.b16 %v185
    %v787 = vunpack.c.h.b16 %v185
    %v788 = vunpack.c.l.b16 %v186
    %v789 = vunpack.c.h.b16 %v186
    %v790 = vunpack.c.l.b16 %v187
    %v791 = vunpack.c.h.b16 %v187
    %v792 = vunpack.c.l.b16 %v188
    %v793 = vunpack.c.h.b16 %v188
    %v794 = vunpack.c.l.b16 %v189
    %v795 = vunpack.c.h.b16 %v189
    %v796 = vunpack.c.l.b16 %v190
    %v797 = vunpack.c.h.b16 %v190
    %v798 = vunpack.c.l.b16 %v191
    %v799 = vunpack.c.h.b16 %v191
    %v800 = vunpack.c.l.b16 %v192
    %v801 = vunpack.c.h.b16 %v192
    %v802 = vunpack.c.l.b16 %v193
    %v803 = vunpack.c.h.b16 %v193
    %v804 = vunpack.c.l.b16 %v194
    %v805 = vunpack.c.h.b16 %v194
    %v806 = vunpack.c.l.b16 %v195
    %v807 = vunpack.c.h.b16 %v195
    %v808 = vunpack.c.l.b16 %v196
    %v809 = vunpack.c.h.b16 %v196
    %v810 = vunpack.c.l.b16 %v197
    %v811 = vunpack.c.h.b16 %v197
    %v812 = vunpack.c.l.b16 %v198
    %v813 = vunpack.c.h.b16 %v198
    %v814 = vunpack.c.l.b16 %v199
    %v815 = vunpack.c.h.b16 %v199
    %v816 = vunpack.c.l.b16 %v200
    %v817 = vunpack.c.h.b16 %v200
    %v818 = vunpack.c.l.b16 %v201
    %v819 = vunpack.c.h.b16 %v201
    %v820 = vunpack.c.l.b16 %v202
    %v821 = vunpack.c.h.b16 %v202
    %v822 = vunpack.c.l.b16 %v203
    %v823 = vunpack.c.h.b16 %v203
    %v824 = vunpack.c.l.b16 %v204
    %v825 = vunpack.c.h.b16 %v204
    %v826 = vunpack.c.l.b16 %v205
    %v827 = vunpack.c.h.b16 %v205
    %v828 = vunpack.c.l.b16 %v206
    %v829 = vunpack.c.h.b16 %v206
    %v830 = vunpack.c.l.b16 %v207
    %v831 = vunpack.c.h.b16 %v207
    %v832 = vunpack.c.l.b16 %v208
    %v833 = vunpack.c.h.b16 %v208
    %v834 = vunpack.c.l.b16 %v209
    %v835 = vunpack.c.h.b16 %v209
    %v836 = vunpack.c.l.b16 %v210
    %v837 = vunpack.c.h.b16 %v210
    %v838 = vunpack.c.l.b16 %v211
    %v839 = vunpack.c.h.b16 %v211
    %v840 = vunpack.c.l.b16 %v212
    %v841 = vunpack.c.h.b16 %v212
    %v842 = vunpack.c.l.b16 %v213
    %v843 = vunpack.c.h.b16 %v213
    %v844 = vunpack.c.l.b16 %v214
    %v845 = vunpack.c.h.b16 %v214
    %v846 = vunpack.c.l.b16 %v215
    %v847 = vunpack.c.h.b16 %v215
    %v848 = vunpack.c.l.b16 %v216
    %v849 = vunpack.c.h.b16 %v216
    %v850 = vunpack.c.l.b16 %v217
    %v851 = vunpack.c.h.b16 %v217
    %v852 = vunpack.c.l.b16 %v218
    %v853 = vunpack.c.h.b16 %v218
    %v854 = vunpack.c.l.b16 %v219
    %v855 = vunpack.c.h.b16 %v219
    %v856 = vunpack.c.l.b16 %v220
    %v857 = vunpack.c.h.b16 %v220
    %v858 = vunpack.c.l.b16 %v221
    %v859 = vunpack.c.h.b16 %v221
    %v860 = vunpack.c.l.b16 %v222
    %v861 = vunpack.c.h.b16 %v222
    %v862 = vunpack.c.l.b16 %v223
    %v863 = vunpack.c.h.b16 %v223
    %v864 = vunpack.c.l.b16 %v224
    %v865 = vunpack.c.h.b16 %v224
    %v866 = vunpack.c.l.b16 %v225
    %v867 = vunpack.c.h.b16 %v225
    %v868 = vunpack.c.l.b16 %v226
    %v869 = vunpack.c.h.b16 %v226
    %v870 = vunpack.c.l.b16 %v227
    %v871 = vunpack.c.h.b16 %v227
    %v872 = vunpack.c.l.b16 %v228
    %v873 = vunpack.c.h.b16 %v228
    %v874 = vunpack.c.l.b16 %v229
    %v875 = vunpack.c.h.b16 %v229
    %v876 = vunpack.c.l.b16 %v230
    %v877 = vunpack.c.h.b16 %v230
    %v878 = vunpack.c.l.b16 %v231
    %v879 = vunpack.c.h.b16 %v231
    %v880 = vunpack.c.l.b16 %v232
    %v881 = vunpack.c.h.b16 %v232
    %v882 = vunpack.c.l.b16 %v233
    %v883 = vunpack.c.h.b16 %v233
    %v884 = vunpack.c.l.b16 %v234
    %v885 = vunpack.c.h.b16 %v234
    %v886 = vunpack.c.l.b16 %v235
    %v887 = vunpack.c.h.b16 %v235
    %v888 = vunpack.c.l.b16 %v236
    %v889 = vunpack.c.h.b16 %v236
    %v890 = vunpack.c.l.b16 %v237
    %v891 = vunpack.c.h.b16 %v237
    %v892 = vunpack.c.l.b16 %v238
    %v893 = vunpack.c.h.b16 %v238
    %v894 = vunpack.c.l.b16 %v239
    %v895 = vunpack.c.h.b16 %v239
    %v896 = vunpack.c.l.b16 %v240
    %v897 = vunpack.c.h.b16 %v240
    %v898 = vunpack.c.l.b16 %v241
    %v899 = vunpack.c.h.b16 %v241
    %v900 = vunpack.c.l.b16 %v242
    %v901 = vunpack.c.h.b16 %v242
    %v902 = vunpack.c.l.b16 %v243
    %v903 = vunpack.c.h.b16 %v243
    %v904 = vunpack.c.l.b16 %v244
    %v905 = vunpack.c.h.b16 %v244
    %v906 = vunpack.c.l.b16 %v245
    %v907 = vunpack.c.h.b16 %v245
    %v908 = vunpack.c.l.b16 %v246
    %v909 = vunpack.c.h.b16 %v246
    %v910 = vunpack.c.l.b16 %v247
    %v911 = vunpack.c.h.b16 %v247
    %v912 = vunpack.c.l.b16 %v248
    %v913 = vunpack.c.h.b16 %v248
    %v914 = vunpack.c.l.b16 %v249
    %v915 = vunpack.c.h.b16 %v249
    %v916 = vunpack.c.l.b16 %v250
    %v917 = vunpack.c.h.b16 %v250
    %v918 = vunpack.c.l.b16 %v251
    %v919 = vunpack.c.h.b16 %v251
    %v920 = vunpack.c.l.b16 %v252
    %v921 = vunpack.c.h.b16 %v252
    %v922 = vunpack.c.l.b16 %v253
    %v923 = vunpack.c.h.b16 %v253
    %v924 = vunpack.c.l.b16 %v254
    %v925 = vunpack.c.h.b16 %v254
    %v926 = vunpack.c.l.b16 %v255
    %v927 = vunpack.c.h.b16 %v255
    %v928 = vunpack.c.l.b16 %v256
    %v929 = vunpack.c.h.b16 %v256
    %v930 = vunpack.c.l.b16 %v257
    %v931 = vunpack.c.h.b16 %v257
    %v932 = vunpack.c.l.b16 %v258
    %v933 = vunpack.c.h.b16 %v258
    %v934 = vunpack.c.l.b16 %v259
    %v935 = vunpack.c.h.b16 %v259
    %v936 = vunpack.c.l.b16 %v260
    %v937 = vunpack.c.h.b16 %v260
    %v938 = vunpack.c.l.b16 %v261
    %v939 = vunpack.c.h.b16 %v261
    %v940 = vunpack.c.l.b16 %v262
    %v941 = vunpack.c.h.b16 %v262
    %v942 = vunpack.c.l.b16 %v263
    %v943 = vunpack.c.h.b16 %v263
    %v944 = vunpack.c.l.b16 %v264
    %v945 = vunpack.c.h.b16 %v264
    %v946 = vunpack.c.l.b16 %v265
    %v947 = vunpack.c.h.b16 %v265
    %v948 = vunpack.c.l.b16 %v266
    %v949 = vunpack.c.h.b16 %v266
    %v950 = vunpack.c.l.b16 %v267
    %v951 = vunpack.c.h.b16 %v267
    %v952 = vunpack.c.l.b16 %v268
    %v953 = vunpack.c.h.b16 %v268
    %v954 = vunpack.c.l.b16 %v269
    %v955 = vunpack.c.h.b16 %v269
    %v956 = vunpack.c.l.b16 %v270
    %v957 = vunpack.c.h.b16 %v270
    %v958 = vunpack.c.l.b16 %v271
    %v959 = vunpack.c.h.b16 %v271
    %v960 = vunpack.c.l.b16 %v272
    %v961 = vunpack.c.h.b16 %v272
    %v962 = vunpack.c.l.b16 %v273
    %v963 = vunpack.c.h.b16 %v273
    %v964 = vunpack.c.l.b16 %v274
    %v965 = vunpack.c.h.b16 %v274
    %v966 = vunpack.c.l.b16 %v275
    %v967 = vunpack.c.h.b16 %v275
    %v968 = vunpack.c.l.b16 %v276
    %v969 = vunpack.c.h.b16 %v276
    %v970 = vunpack.c.l.b16 %v277
    %v971 = vunpack.c.h.b16 %v277
    %v972 = vunpack.c.l.b16 %v278
    %v973 = vunpack.c.h.b16 %v278
    %v974 = vunpack.c.l.b16 %v279
    %v975 = vunpack.c.h.b16 %v279
    %v976 = vunpack.c.l.b16 %v280
    %v977 = vunpack.c.h.b16 %v280
    %v978 = vunpack.c.l.b16 %v281
    %v979 = vunpack.c.h.b16 %v281
    %v980 = vunpack.c.l.b16 %v282
    %v981 = vunpack.c.h.b16 %v282
    %v982 = vunpack.c.l.b16 %v283
    %v983 = vunpack.c.h.b16 %v283
    %v984 = vunpack.c.l.b16 %v284
    %v985 = vunpack.c.h.b16 %v284
    %v986 = vunpack.c.l.b16 %v285
    %v987 = vunpack.c.h.b16 %v285
    %v988 = vunpack.c.l.b16 %v286
    %v989 = vunpack.c.h.b16 %v286
    %v990 = vunpack.c.l.b16 %v287
    %v991 = vunpack.c.h.b16 %v287
    %v992 = vunpack.c.l.b16 %v288
    %v993 = vunpack.c.h.b16 %v288
    %v994 = vunpack.c.l.b16 %v289
    %v995 = vunpack.c.h.b16 %v289
    %v996 = vunpack.c.l.b16 %v290
    %v997 = vunpack.c.h.b16 %v290
    %v998 = vunpack.c.l.b16 %v291
    %v999 = vunpack.c.h.b16 %v291
    %v1000 = vunpack.c.l.b16 %v292
    %v1001 = vunpack.c.h.b16 %v292
    %v1002 = vunpack.c.l.b16 %v293
    %v1003 = vunpack.c.h.b16 %v293
    %v1004 = vunpack.c.l.b16 %v294
    %v1005 = vunpack.c.h.b16 %v294
    %v1006 = vunpack.c.l.b16 %v295
    %v1007 = vunpack.c.h.b16 %v295
    %v1008 = vunpack.c.l.b16 %v296
    %v1009 = vunpack.c.h.b16 %v296
    %v1010 = vunpack.c.l.b16 %v297
    %v1011 = vunpack.c.h.b16 %v297
    %v1012 = vunpack.c.l.b16 %v298
    %v1013 = vunpack.c.h.b16 %v298
    %v1014 = vunpack.c.l.b16 %v299
    %v1015 = vunpack.c.h.b16 %v299
    %v1016 = vunpack.c.l.b16 %v300
    %v1017 = vunpack.c.h.b16 %v300
    %v1018 = vunpack.c.l.b16 %v301
    %v1019 = vunpack.c.h.b16 %v301
    %v1020 = vunpack.c.l.b16 %v302
    %v1021 = vunpack.c.h.b16 %v302
    %v1022 = vunpack.c.l.b16 %v303
    %v1023 = vunpack.c.h.b16 %v303
    %v1024 = vunpack.c.l.b16 %v304
    %v1025 = vunpack.c.h.b16 %v304
    %v1026 = vunpack.c.l.b16 %v305
    %v1027 = vunpack.c.h.b16 %v305
    %v1028 = vunpack.c.l.b16 %v306
    %v1029 = vunpack.c.h.b16 %v306
    %v1030 = vunpack.c.l.b16 %v307
    %v1031 = vunpack.c.h.b16 %v307
    %v1032 = vunpack.c.l.b16 %v308
    %v1033 = vunpack.c.h.b16 %v308
    %v1034 = vunpack.c.l.b16 %v309
    %v1035 = vunpack.c.h.b16 %v309
    %v1036 = vunpack.c.l.b16 %v310
    %v1037 = vunpack.c.h.b16 %v310
    %v1038 = vunpack.c.l.b16 %v311
    %v1039 = vunpack.c.h.b16 %v311
    %v1040 = vunpack.c.l.b16 %v312
    %v1041 = vunpack.c.h.b16 %v312
    %v1042 = vunpack.c.l.b16 %v313
    %v1043 = vunpack.c.h.b16 %v313
    %v1044 = vunpack.c.l.b16 %v314
    %v1045 = vunpack.c.h.b16 %v314
    %v1046 = vunpack.c.l.b16 %v315
    %v1047 = vunpack.c.h.b16 %v315
    %v1048 = vunpack.c.l.b16 %v316
    %v1049 = vunpack.c.h.b16 %v316
    %v1050 = vunpack.c.l.b16 %v317
    %v1051 = vunpack.c.h.b16 %v317
    %v1052 = vunpack.c.l.b16 %v318
    %v1053 = vunpack.c.h.b16 %v318
    %v1054 = vunpack.c.l.b16 %v319
    %v1055 = vunpack.c.h.b16 %v319
    %v1056 = vunpack.c.l.b16 %v320
    %v1057 = vunpack.c.h.b16 %v320
    %v1058 = vunpack.c.l.b16 %v321
    %v1059 = vunpack.c.h.b16 %v321
    %v1060 = vunpack.c.l.b16 %v322
    %v1061 = vunpack.c.h.b16 %v322
    %v1062 = vunpack.c.l.b16 %v323
    %v1063 = vunpack.c.h.b16 %v323
    %v1064 = vunpack.c.l.b16 %v324
    %v1065 = vunpack.c.h.b16 %v324
    %v1066 = vunpack.c.l.b16 %v325
    %v1067 = vunpack.c.h.b16 %v325
    %v1068 = vunpack.c.l.b16 %v326
    %v1069 = vunpack.c.h.b16 %v326
    %v1070 = vunpack.c.l.b16 %v327
    %v1071 = vunpack.c.h.b16 %v327
    %v1072 = vunpack.c.l.b16 %v328
    %v1073 = vunpack.c.h.b16 %v328
    %v1074 = vunpack.c.l.b16 %v329
    %v1075 = vunpack.c.h.b16 %v329
    %v1076 = vunpack.c.l.b16 %v330
    %v1077 = vunpack.c.h.b16 %v330
    %v1078 = vunpack.c.l.b16 %v331
    %v1079 = vunpack.c.h.b16 %v331
    %v1080 = vunpack.c.l.b16 %v332
    %v1081 = vunpack.c.h.b16 %v332
    %v1082 = vunpack.c.l.b16 %v333
    %v1083 = vunpack.c.h.b16 %v333
    %v1084 = vunpack.c.l.b16 %v334
    %v1085 = vunpack.c.h.b16 %v334
    %v1086 = vunpack.c.l.b16 %v335
    %v1087 = vunpack.c.h.b16 %v335
    %v1088 = vunpack.c.l.b16 %v336
    %v1089 = vunpack.c.h.b16 %v336
    %v1090 = vunpack.c.l.b16 %v337
    %v1091 = vunpack.c.h.b16 %v337
    %v1092 = vunpack.c.l.b16 %v338
    %v1093 = vunpack.c.h.b16 %v338
    %v1094 = vunpack.c.l.b16 %v339
    %v1095 = vunpack.c.h.b16 %v339
    %v1096 = vunpack.c.l.b16 %v340
    %v1097 = vunpack.c.h.b16 %v340
    %v1098 = vunpack.c.l.b16 %v341
    %v1099 = vunpack.c.h.b16 %v341
    %v1100 = vunpack.c.l.b16 %v342
    %v1101 = vunpack.c.h.b16 %v342
    %v1102 = vunpack.c.l.b16 %v343
    %v1103 = vunpack.c.h.b16 %v343
    %v1104 = vunpack.c.l.b16 %v344
    %v1105 = vunpack.c.h.b16 %v344
    %v1106 = vunpack.c.l.b16 %v345
    %v1107 = vunpack.c.h.b16 %v345
    %v1108 = vunpack.c.l.b16 %v346
    %v1109 = vunpack.c.h.b16 %v346
    %v1110 = vunpack.c.l.b16 %v347
    %v1111 = vunpack.c.h.b16 %v347
    %v1112 = vunpack.c.l.b16 %v348
    %v1113 = vunpack.c.h.b16 %v348
    %v1114 = vunpack.c.l.b16 %v349
    %v1115 = vunpack.c.h.b16 %v349
    %v1116 = vunpack.c.l.b16 %v350
    %v1117 = vunpack.c.h.b16 %v350
    %v1118 = vunpack.c.l.b16 %v351
    %v1119 = vunpack.c.h.b16 %v351
    %v1120 = vunpack.c.l.b16 %v352
    %v1121 = vunpack.c.h.b16 %v352
    %v1122 = vunpack.c.l.b16 %v353
    %v1123 = vunpack.c.h.b16 %v353
    %v1124 = vunpack.c.l.b16 %v354
    %v1125 = vunpack.c.h.b16 %v354
    %v1126 = vunpack.c.l.b16 %v355
    %v1127 = vunpack.c.h.b16 %v355
    %v1128 = vunpack.c.l.b16 %v356
    %v1129 = vunpack.c.h.b16 %v356
    %v1130 = vunpack.c.l.b16 %v357
    %v1131 = vunpack.c.h.b16 %v357
    %v1132 = vunpack.c.l.b16 %v358
    %v1133 = vunpack.c.h.b16 %v358
    %v1134 = vunpack.c.l.b16 %v359
    %v1135 = vunpack.c.h.b16 %v359
    %v1136 = vunpack.c.l.b16 %v360
    %v1137 = vunpack.c.h.b16 %v360
    %v1138 = vunpack.c.l.b16 %v361
    %v1139 = vunpack.c.h.b16 %v361
    %v1140 = vunpack.c.l.b16 %v362
    %v1141 = vunpack.c.h.b16 %v362
    %v1142 = vunpack.c.l.b16 %v363
    %v1143 = vunpack.c.h.b16 %v363
    %v1144 = vpack.c.b16 %v634, %v632
    %v1145 = vpack.c.b16 %v635, %v633
    %v1146 = vpack.c.b16 %v638, %v636
    %v1147 = vpack.c.b16 %v639, %v637
    %v1148 = vpack.c.b16 %v642, %v640
    %v1149 = vpack.c.b16 %v643, %v641
    %v1150 = vpack.c.b16 %v646, %v644
    %v1151 = vpack.c.b16 %v647, %v645
    %v1152 = vpack.c.b16 %v650, %v648
    %v1153 = vpack.c.b16 %v651, %v649
    %v1154 = vpack.c.b16 %v654, %v652
    %v1155 = vpack.c.b16 %v655, %v653
    %v1156 = vpack.c.b16 %v658, %v656
    %v1157 = vpack.c.b16 %v659, %v657
    %v1158 = vpack.c.b16 %v662, %v660
    %v1159 = vpack.c.b16 %v663, %v661
    %v1160 = vpack.c.b16 %v666, %v664
    %v1161 = vpack.c.b16 %v667, %v665
    %v1162 = vpack.c.b16 %v670, %v668
    %v1163 = vpack.c.b16 %v671, %v669
    %v1164 = vpack.c.b16 %v674, %v672
    %v1165 = vpack.c.b16 %v675, %v673
    %v1166 = vpack.c.b16 %v678, %v676
    %v1167 = vpack.c.b16 %v679, %v677
    %v1168 = vpack.c.b16 %v682, %v680
    %v1169 = vpack.c.b16 %v683, %v681
    %v1170 = vpack.c.b16 %v686, %v684
    %v1171 = vpack.c.b16 %v687, %v685
    %v1172 = vpack.c.b16 %v690, %v688
    %v1173 = vpack.c.b16 %v691, %v689
    %v1174 = vpack.c.b16 %v694, %v692
    %v1175 = vpack.c.b16 %v695, %v693
    %v1176 = vpack.c.b16 %v698, %v696
    %v1177 = vpack.c.b16 %v699, %v697
    %v1178 = vpack.c.b16 %v702, %v700
    %v1179 = vpack.c.b16 %v703, %v701
    %v1180 = vpack.c.b16 %v706, %v704
    %v1181 = vpack.c.b16 %v707, %v705
    %v1182 = vpack.c.b16 %v710, %v708
    %v1183 = vpack.c.b16 %v711, %v709
    %v1184 = vpack.c.b16 %v714, %v712
    %v1185 = vpack.c.b16 %v715, %v713
    %v1186 = vpack.c.b16 %v718, %v716
    %v1187 = vpack.c.b16 %v719, %v717
    %v1188 = vpack.c.b16 %v722, %v720
    %v1189 = vpack.c.b16 %v723, %v721
    %v1190 = vpack.c.b16 %v726, %v724
    %v1191 = vpack.c.b16 %v727, %v725
    %v1192 = vpack.c.b16 %v730, %v728
    %v1193 = vpack.c.b16 %v731, %v729
    %v1194 = vpack.c.b16 %v734, %v732
    %v1195 = vpack.c.b16 %v735, %v733
    %v1196 = vpack.c.b16 %v738, %v736
    %v1197 = vpack.c.b16 %v739, %v737
    %v1198 = vpack.c.b16 %v742, %v740
    %v1199 = vpack.c.b16 %v743, %v741
    %v1200 = vpack.c.b16 %v746, %v744
    %v1201 = vpack.c.b16 %v747, %v745
    %v1202 = vpack.c.b16 %v750, %v748
    %v1203 = vpack.c.b16 %v751, %v749
    %v1204 = vpack.c.b16 %v754, %v752
    %v1205 = vpack.c.b16 %v755, %v753
    %v1206 = vpack.c.b16 %v758, %v756
    %v1207 = vpack.c.b16 %v759, %v757
    %v1208 = vpack.c.b16 %v762, %v760
    %v1209 = vpack.c.b16 %v763, %v761
    %v1210 = vpack.c.b16 %v766, %v764
    %v1211 = vpack.c.b16 %v767, %v765
    %v1212 = vpack.c.b16 %v770, %v768
    %v1213 = vpack.c.b16 %v771, %v769
    %v1214 = vpack.c.b16 %v774, %v772
    %v1215 = vpack.c.b16 %v775, %v773
    %v1216 = vpack.c.b16 %v778, %v776
    %v1217 = vpack.c.b16 %v779, %v777
    %v1218 = vpack.c.b16 %v782, %v780
    %v1219 = vpack.c.b16 %v783, %v781
    %v1220 = vpack.c.b16 %v786, %v784
    %v1221 = vpack.c.b16 %v787, %v785
    %v1222 = vpack.c.b16 %v790, %v788
    %v1223 = vpack.c.b16 %v791, %v789
    %v1224 = vpack.c.b16 %v794, %v792
    %v1225 = vpack.c.b16 %v795, %v793
    %v1226 = vpack.c.b16 %v798, %v796
    %v1227 = vpack.c.b16 %v799, %v797
    %v1228 = vpack.c.b16 %v802, %v800
    %v1229 = vpack.c.b16 %v803, %v801
    %v1230 = vpack.c.b16 %v806, %v804
    %v1231 = vpack.c.b16 %v807, %v805
    %v1232 = vpack.c.b16 %v810, %v808
    %v1233 = vpack.c.b16 %v811, %v809
    %v1234 = vpack.c.b16 %v814, %v812
    %v1235 = vpack.c.b16 %v815, %v813
    %v1236 = vpack.c.b16 %v818, %v816
    %v1237 = vpack.c.b16 %v819, %v817
    %v1238 = vpack.c.b16 %v822, %v820
    %v1239 = vpack.c.b16 %v823, %v821
    %v1240 = vpack.c.b16 %v826, %v824
    %v1241 = vpack.c.b16 %v827, %v825
    %v1242 = vpack.c.b16 %v830, %v828
    %v1243 = vpack.c.b16 %v831, %v829
    %v1244 = vpack.c.b16 %v834, %v832
    %v1245 = vpack.c.b16 %v835, %v833
    %v1246 = vpack.c.b16 %v838, %v836
    %v1247 = vpack.c.b16 %v839, %v837
    %v1248 = vpack.c.b16 %v842, %v840
    %v1249 = vpack.c.b16 %v843, %v841
    %v1250 = vpack.c.b16 %v846, %v844
    %v1251 = vpack.c.b16 %v847, %v845
    %v1252 = vpack.c.b16 %v850, %v848
    %v1253 = vpack.c.b16 %v851, %v849
    %v1254 = vpack.c.b16 %v854, %v852
    %v1255 = vpack.c.b16 %v855, %v853
    %v1256 = vpack.c.b16 %v858, %v856
    %v1257 = vpack.c.b16 %v859, %v857
    %v1258 = vpack.c.b16 %v862, %v860
    %v1259 = vpack.c.b16 %v863, %v861
    %v1260 = vpack.c.b16 %v866, %v864
    %v1261 = vpack.c.b16 %v867, %v865
    %v1262 = vpack.c.b16 %v870, %v868
    %v1263 = vpack.c.b16 %v871, %v869
    %v1264 = vpack.c.b16 %v874, %v872
    %v1265 = vpack.c.b16 %v875, %v873
    %v1266 = vpack.c.b16 %v878, %v876
    %v1267 = vpack.c.b16 %v879, %v877
    %v1268 = vpack.c.b16 %v882, %v880
    %v1269 = vpack.c.b16 %v883, %v881
    %v1270 = vpack.c.b16 %v886, %v884
    %v1271 = vpack.c.b16 %v887, %v885
    %v1272 = vpack.c.b16 %v890, %v888
    %v1273 = vpack.c.b16 %v891, %v889
    %v1274 = vpack.c.b16 %v894, %v892
    %v1275 = vpack.c.b16 %v895, %v893
    %v1276 = vpack.c.b16 %v898, %v896
    %v1277 = vpack.c.b16 %v899, %v897
    %v1278 = vpack.c.b16 %v902, %v900
    %v1279 = vpack.c.b16 %v903, %v901
    %v1280 = vpack.c.b16 %v906, %v904
    %v1281 = vpack.c.b16 %v907, %v905
    %v1282 = vpack.c.b16 %v910, %v908
    %v1283 = vpack.c.b16 %v911, %v909
    %v1284 = vpack.c.b16 %v914, %v912
    %v1285 = vpack.c.b16 %v915, %v913
    %v1286 = vpack.c.b16 %v918, %v916
    %v1287 = vpack.c.b16 %v919, %v917
    %v1288 = vpack.c.b16 %v922, %v920
    %v1289 = vpack.c.b16 %v923, %v921
    %v1290 = vpack.c.b16 %v926, %v924
    %v1291 = vpack.c.b16 %v927, %v925
    %v1292 = vpack.c.b16 %v930, %v928
    %v1293 = vpack.c.b16 %v931, %v929
    %v1294 = vpack.c.b16 %v934, %v932
    %v1295 = vpack.c.b16 %v935, %v933
    %v1296 = vpack.c.b16 %v938, %v936
    %v1297 = vpack.c.b16 %v939, %v937
    %v1298 = vpack.c.b16 %v942, %v940
    %v1299 = vpack.c.b16 %v943, %v941
    %v1300 = vpack.c.b16 %v946, %v944
    %v1301 = vpack.c.b16 %v947, %v945
    %v1302 = vpack.c.b16 %v950, %v948
    %v1303 = vpack.c.b16 %v951, %v949
    %v1304 = vpack.c.b16 %v954, %v952
    %v1305 = vpack.c.b16 %v955, %v953
    %v1306 = vpack.c.b16 %v958, %v956
    %v1307 = vpack.c.b16 %v959, %v957
    %v1308 = vpack.c.b16 %v962, %v960
    %v1309 = vpack.c.b16 %v963, %v961
    %v1310 = vpack.c.b16 %v966, %v964
    %v1311 = vpack.c.b16 %v967, %v965
    %v1312 = vpack.c.b16 %v970, %v968
    %v1313 = vpack.c.b16 %v971, %v969
    %v1314 = vpack.c.b16 %v974, %v972
    %v1315 = vpack.c.b16 %v975, %v973
    %v1316 = vpack.c.b16 %v978, %v976
    %v1317 = vpack.c.b16 %v979, %v977
    %v1318 = vpack.c.b16 %v982, %v980
    %v1319 = vpack.c.b16 %v983, %v981
    %v1320 = vpack.c.b16 %v986, %v984
    %v1321 = vpack.c.b16 %v987, %v985
    %v1322 = vpack.c.b16 %v990, %v988
    %v1323 = vpack.c.b16 %v991, %v989
    %v1324 = vpack.c.b16 %v994, %v992
    %v1325 = vpack.c.b16 %v995, %v993
    %v1326 = vpack.c.b16 %v998, %v996
    %v1327 = vpack.c.b16 %v999, %v997
    %v1328 = vpack.c.b16 %v1002, %v1000
    %v1329 = vpack.c.b16 %v1003, %v1001
    %v1330 = vpack.c.b16 %v1006, %v1004
    %v1331 = vpack.c.b16 %v1007, %v1005
    %v1332 = vpack.c.b16 %v1010, %v1008
    %v1333 = vpack.c.b16 %v1011, %v1009
    %v1334 = vpack.c.b16 %v1014, %v1012
    %v1335 = vpack.c.b16 %v1015, %v1013
    %v1336 = vpack.c.b16 %v1018, %v1016
    %v1337 = vpack.c.b16 %v1019, %v1017
    %v1338 = vpack.c.b16 %v1022, %v1020
    %v1339 = vpack.c.b16 %v1023, %v1021
    %v1340 = vpack.c.b16 %v1026, %v1024
    %v1341 = vpack.c.b16 %v1027, %v1025
    %v1342 = vpack.c.b16 %v1030, %v1028
    %v1343 = vpack.c.b16 %v1031, %v1029
    %v1344 = vpack.c.b16 %v1034, %v1032
    %v1345 = vpack.c.b16 %v1035, %v1033
    %v1346 = vpack.c.b16 %v1038, %v1036
    %v1347 = vpack.c.b16 %v1039, %v1037
    %v1348 = vpack.c.b16 %v1042, %v1040
    %v1349 = vpack.c.b16 %v1043, %v1041
    %v1350 = vpack.c.b16 %v1046, %v1044
    %v1351 = vpack.c.b16 %v1047, %v1045
    %v1352 = vpack.c.b16 %v1050, %v1048
    %v1353 = vpack.c.b16 %v1051, %v1049
    %v1354 = vpack.c.b16 %v1054, %v1052
    %v1355 = vpack.c.b16 %v1055, %v1053
    %v1356 = vpack.c.b16 %v1058, %v1056
    %v1357 = vpack.c.b16 %v1059, %v1057
    %v1358 = vpack.c.b16 %v1062, %v1060
    %v1359 = vpack.c.b16 %v1063, %v1061
    %v1360 = vpack.c.b16 %v1066, %v1064
    %v1361 = vpack.c.b16 %v1067, %v1065
    %v1362 = vpack.c.b16 %v1070, %v1068
    %v1363 = vpack.c.b16 %v1071, %v1069
    %v1364 = vpack.c.b16 %v1074, %v1072
    %v1365 = vpack.c.b16 %v1075, %v1073
    %v1366 = vpack.c.b16 %v1078, %v1076
    %v1367 = vpack.c.b16 %v1079, %v1077
    %v1368 = vpack.c.b16 %v1082, %v1080
    %v1369 = vpack.c.b16 %v1083, %v1081
    %v1370 = vpack.c.b16 %v1086, %v1084
    %v1371 = vpack.c.b16 %v1087, %v1085
    %v1372 = vpack.c.b16 %v1090, %v1088
    %v1373 = vpack.c.b16 %v1091, %v1089
    %v1374 = vpack.c.b16 %v1094, %v1092
    %v1375 = vpack.c.b16 %v1095, %v1093
    %v1376 = vpack.c.b16 %v1098, %v1096
    %v1377 = vpack.c.b16 %v1099, %v1097
    %v1378 = vpack.c.b16 %v1102, %v1100
    %v1379 = vpack.c.b16 %v1103, %v1101
    %v1380 = vpack.c.b16 %v1106, %v1104
    %v1381 = vpack.c.b16 %v1107, %v1105
    %v1382 = vpack.c.b16 %v1110, %v1108
    %v1383 = vpack.c.b16 %v1111, %v1109
    %v1384 = vpack.c.b16 %v1114, %v1112
    %v1385 = vpack.c.b16 %v1115, %v1113
    %v1386 = vpack.c.b16 %v1118, %v1116
    %v1387 = vpack.c.b16 %v1119, %v1117
    %v1388 = vpack.c.b16 %v1122, %v1120
    %v1389 = vpack.c.b16 %v1123, %v1121
    %v1390 = vpack.c.b16 %v1126, %v1124
    %v1391 = vpack.c.b16 %v1127, %v1125
    %v1392 = vpack.c.b16 %v1130, %v1128
    %v1393 = vpack.c.b16 %v1131, %v1129
    %v1394 = vpack.c.b16 %v1134, %v1132
    %v1395 = vpack.c.b16 %v1135, %v1133
    %v1396 = vpack.c.b16 %v1138, %v1136
    %v1397 = vpack.c.b16 %v1139, %v1137
    %v1398 = vpack.c.b16 %v1142, %v1140
    %v1399 = vpack.c.b16 %v1143, %v1141
    %1656 = vmatprep.subr.bf16.mxu0 %v1159
    %1657 = vmatpush1.bf16.msra.mxu0 %v1158
    %1658 = vmatprep.subr.bf16.mxu0 %v1157
    %1659 = vmatpush1.bf16.msra.mxu0 %v1156
    %1660 = vmatprep.subr.bf16.mxu0 %v1155
    %1661 = vmatpush1.bf16.msra.mxu0 %v1154
    %1662 = vmatprep.subr.bf16.mxu0 %v1153
    %1663 = vmatpush1.bf16.msra.mxu0 %v1152
    %1664 = vmatprep.subr.bf16.mxu0 %v1151
    %1665 = vmatpush1.bf16.msra.mxu0 %v1150
    %1666 = vmatprep.subr.bf16.mxu0 %v1149
    %1667 = vmatpush1.bf16.msra.mxu0 %v1148
    %1668 = vmatprep.subr.bf16.mxu0 %v1147
    %1669 = vmatpush1.bf16.msra.mxu0 %v1146
    %1670 = vmatprep.subr.bf16.mxu0 %v1145
    %1671 = vmatpush1.bf16.msra.mxu0 %v1144
    %1672 = vmatprep.subr.bf16.mxu0 %v1175
    %1673 = vmatpush2.bf16.msra.mxu0 %v1174
    %1674 = vmatprep.subr.bf16.mxu0 %v1173
    %1675 = vmatpush2.bf16.msra.mxu0 %v1172
    %1676 = vmatprep.subr.bf16.mxu0 %v1171
    %1677 = vmatpush2.bf16.msra.mxu0 %v1170
    %1678 = vmatprep.subr.bf16.mxu0 %v1169
    %1679 = vmatpush2.bf16.msra.mxu0 %v1168
    %1680 = vmatprep.subr.bf16.mxu0 %v1167
    %1681 = vmatpush2.bf16.msra.mxu0 %v1166
    %1682 = vmatprep.subr.bf16.mxu0 %v1165
    %1683 = vmatpush2.bf16.msra.mxu0 %v1164
    %1684 = vmatprep.subr.bf16.mxu0 %v1163
    %1685 = vmatpush2.bf16.msra.mxu0 %v1162
    %1686 = vmatprep.subr.bf16.mxu0 %v1161
    %1687 = vmatpush2.bf16.msra.mxu0 %v1160
    %1688 = vmatprep.mubr.bf16.mxu0 %v92
    %1689 = vmatmul.mubr.bf16.gmra.mxu0 %v91
    %v1690 = vpop.f32.mrf.mxu0
    %v1691 = vadd.f32 %v369, %v1690
    %v1692 = vpop.f32.mrf.mxu0
    %v1693 = vadd.f32 %v373, %v1692
    %v1694 = vpop.f32.mrf.mxu0
    %v1695 = vpop.f32.mrf.mxu0
    %1696 = vdwg.mxu0
    %1697 = vmatprep.subr.bf16.mxu0 %v1191
    %1698 = vmatpush1.bf16.msra.mxu0 %v1190
    %1699 = vmatprep.subr.bf16.mxu0 %v1189
    %1700 = vmatpush1.bf16.msra.mxu0 %v1188
    %1701 = vmatprep.subr.bf16.mxu0 %v1187
    %1702 = vmatpush1.bf16.msra.mxu0 %v1186
    %1703 = vmatprep.subr.bf16.mxu0 %v1185
    %1704 = vmatpush1.bf16.msra.mxu0 %v1184
    %1705 = vmatprep.subr.bf16.mxu0 %v1183
    %1706 = vmatpush1.bf16.msra.mxu0 %v1182
    %1707 = vmatprep.subr.bf16.mxu0 %v1181
    %1708 = vmatpush1.bf16.msra.mxu0 %v1180
    %1709 = vmatprep.subr.bf16.mxu0 %v1179
    %1710 = vmatpush1.bf16.msra.mxu0 %v1178
    %1711 = vmatprep.subr.bf16.mxu0 %v1177
    %1712 = vmatpush1.bf16.msra.mxu0 %v1176
    %1713 = vmatprep.subr.bf16.mxu0 %v1207
    %1714 = vmatpush2.bf16.msra.mxu0 %v1206
    %1715 = vmatprep.subr.bf16.mxu0 %v1205
    %1716 = vmatpush2.bf16.msra.mxu0 %v1204
    %1717 = vmatprep.subr.bf16.mxu0 %v1203
    %1718 = vmatpush2.bf16.msra.mxu0 %v1202
    %1719 = vmatprep.subr.bf16.mxu0 %v1201
    %1720 = vmatpush2.bf16.msra.mxu0 %v1200
    %1721 = vmatprep.subr.bf16.mxu0 %v1199
    %1722 = vmatpush2.bf16.msra.mxu0 %v1198
    %1723 = vmatprep.subr.bf16.mxu0 %v1197
    %1724 = vmatpush2.bf16.msra.mxu0 %v1196
    %1725 = vmatprep.subr.bf16.mxu0 %v1195
    %1726 = vmatpush2.bf16.msra.mxu0 %v1194
    %1727 = vmatprep.subr.bf16.mxu0 %v1193
    %1728 = vmatpush2.bf16.msra.mxu0 %v1192
    %1729 = vmatprep.mubr.bf16.mxu0 %v94
    %1730 = vmatmul.mubr.bf16.gmra.mxu0 %v93
    %v1731 = vpop.f32.mrf.mxu0
    %v1732 = vadd.f32 %v1691, %v1731
    %v1733 = vpop.f32.mrf.mxu0
    %v1734 = vadd.f32 %v1693, %v1733
    %v1735 = vpop.f32.mrf.mxu0
    %v1736 = vpop.f32.mrf.mxu0
    %1737 = vdwg.mxu0
    %1738 = vmatprep.subr.bf16.mxu0 %v1223
    %1739 = vmatpush1.bf16.msra.mxu0 %v1222
    %1740 = vmatprep.subr.bf16.mxu0 %v1221
    %1741 = vmatpush1.bf16.msra.mxu0 %v1220
    %1742 = vmatprep.subr.bf16.mxu0 %v1219
    %1743 = vmatpush1.bf16.msra.mxu0 %v1218
    %1744 = vmatprep.subr.bf16.mxu0 %v1217
    %1745 = vmatpush1.bf16.msra.mxu0 %v1216
    %1746 = vmatprep.subr.bf16.mxu0 %v1215
    %1747 = vmatpush1.bf16.msra.mxu0 %v1214
    %1748 = vmatprep.subr.bf16.mxu0 %v1213
    %1749 = vmatpush1.bf16.msra.mxu0 %v1212
    %1750 = vmatprep.subr.bf16.mxu0 %v1211
    %1751 = vmatpush1.bf16.msra.mxu0 %v1210
    %1752 = vmatprep.subr.bf16.mxu0 %v1209
    %1753 = vmatpush1.bf16.msra.mxu0 %v1208
    %1754 = vmatprep.subr.bf16.mxu0 %v1239
    %1755 = vmatpush2.bf16.msra.mxu0 %v1238
    %1756 = vmatprep.subr.bf16.mxu0 %v1237
    %1757 = vmatpush2.bf16.msra.mxu0 %v1236
    %1758 = vmatprep.subr.bf16.mxu0 %v1235
    %1759 = vmatpush2.bf16.msra.mxu0 %v1234
    %1760 = vmatprep.subr.bf16.mxu0 %v1233
    %1761 = vmatpush2.bf16.msra.mxu0 %v1232
    %1762 = vmatprep.subr.bf16.mxu0 %v1231
    %1763 = vmatpush2.bf16.msra.mxu0 %v1230
    %1764 = vmatprep.subr.bf16.mxu0 %v1229
    %1765 = vmatpush2.bf16.msra.mxu0 %v1228
    %1766 = vmatprep.subr.bf16.mxu0 %v1227
    %1767 = vmatpush2.bf16.msra.mxu0 %v1226
    %1768 = vmatprep.subr.bf16.mxu0 %v1225
    %1769 = vmatpush2.bf16.msra.mxu0 %v1224
    %1770 = vmatprep.mubr.bf16.mxu0 %v96
    %1771 = vmatmul.mubr.bf16.gmra.mxu0 %v95
    %v1772 = vpop.f32.mrf.mxu0
    %v1773 = vadd.f32 %v1732, %v1772
    %v1774 = vpop.f32.mrf.mxu0
    %v1775 = vadd.f32 %v1734, %v1774
    %v1776 = vpop.f32.mrf.mxu0
    %v1777 = vpop.f32.mrf.mxu0
    %1778 = vdwg.mxu0
    %1779 = vmatprep.subr.bf16.mxu0 %v1255
    %1780 = vmatpush1.bf16.msra.mxu0 %v1254
    %1781 = vmatprep.subr.bf16.mxu0 %v1253
    %1782 = vmatpush1.bf16.msra.mxu0 %v1252
    %1783 = vmatprep.subr.bf16.mxu0 %v1251
    %1784 = vmatpush1.bf16.msra.mxu0 %v1250
    %1785 = vmatprep.subr.bf16.mxu0 %v1249
    %1786 = vmatpush1.bf16.msra.mxu0 %v1248
    %1787 = vmatprep.subr.bf16.mxu0 %v1247
    %1788 = vmatpush1.bf16.msra.mxu0 %v1246
    %1789 = vmatprep.subr.bf16.mxu0 %v1245
    %1790 = vmatpush1.bf16.msra.mxu0 %v1244
    %1791 = vmatprep.subr.bf16.mxu0 %v1243
    %1792 = vmatpush1.bf16.msra.mxu0 %v1242
    %1793 = vmatprep.subr.bf16.mxu0 %v1241
    %1794 = vmatpush1.bf16.msra.mxu0 %v1240
    %1795 = vmatprep.subr.bf16.mxu0 %v1271
    %1796 = vmatpush2.bf16.msra.mxu0 %v1270
    %1797 = vmatprep.subr.bf16.mxu0 %v1269
    %1798 = vmatpush2.bf16.msra.mxu0 %v1268
    %1799 = vmatprep.subr.bf16.mxu0 %v1267
    %1800 = vmatpush2.bf16.msra.mxu0 %v1266
    %1801 = vmatprep.subr.bf16.mxu0 %v1265
    %1802 = vmatpush2.bf16.msra.mxu0 %v1264
    %1803 = vmatprep.subr.bf16.mxu0 %v1263
    %1804 = vmatpush2.bf16.msra.mxu0 %v1262
    %1805 = vmatprep.subr.bf16.mxu0 %v1261
    %1806 = vmatpush2.bf16.msra.mxu0 %v1260
    %1807 = vmatprep.subr.bf16.mxu0 %v1259
    %1808 = vmatpush2.bf16.msra.mxu0 %v1258
    %1809 = vmatprep.subr.bf16.mxu0 %v1257
    %1810 = vmatpush2.bf16.msra.mxu0 %v1256
    %1811 = vmatprep.mubr.bf16.mxu0 %v98
    %1812 = vmatmul.mubr.bf16.gmra.mxu0 %v97
    %v1813 = vpop.f32.mrf.mxu0
    %v1814 = vadd.f32 %v1773, %v1813
    %v1815 = vpop.f32.mrf.mxu0
    %v1816 = vadd.f32 %v1775, %v1815
    %v1817 = vpop.f32.mrf.mxu0
    %v1818 = vpop.f32.mrf.mxu0
    %1819 = vdwg.mxu0
    %1820 = vmatprep.subr.bf16.mxu0 %v1287
    %1821 = vmatpush1.bf16.msra.mxu0 %v1286
    %1822 = vmatprep.subr.bf16.mxu0 %v1285
    %1823 = vmatpush1.bf16.msra.mxu0 %v1284
    %1824 = vmatprep.subr.bf16.mxu0 %v1283
    %1825 = vmatpush1.bf16.msra.mxu0 %v1282
    %1826 = vmatprep.subr.bf16.mxu0 %v1281
    %1827 = vmatpush1.bf16.msra.mxu0 %v1280
    %1828 = vmatprep.subr.bf16.mxu0 %v1279
    %1829 = vmatpush1.bf16.msra.mxu0 %v1278
    %1830 = vmatprep.subr.bf16.mxu0 %v1277
    %1831 = vmatpush1.bf16.msra.mxu0 %v1276
    %1832 = vmatprep.subr.bf16.mxu0 %v1275
    %1833 = vmatpush1.bf16.msra.mxu0 %v1274
    %1834 = vmatprep.subr.bf16.mxu0 %v1273
    %1835 = vmatpush1.bf16.msra.mxu0 %v1272
    %1836 = vmatprep.subr.bf16.mxu0 %v1303
    %1837 = vmatpush2.bf16.msra.mxu0 %v1302
    %1838 = vmatprep.subr.bf16.mxu0 %v1301
    %1839 = vmatpush2.bf16.msra.mxu0 %v1300
    %1840 = vmatprep.subr.bf16.mxu0 %v1299
    %1841 = vmatpush2.bf16.msra.mxu0 %v1298
    %1842 = vmatprep.subr.bf16.mxu0 %v1297
    %1843 = vmatpush2.bf16.msra.mxu0 %v1296
    %1844 = vmatprep.subr.bf16.mxu0 %v1295
    %1845 = vmatpush2.bf16.msra.mxu0 %v1294
    %1846 = vmatprep.subr.bf16.mxu0 %v1293
    %1847 = vmatpush2.bf16.msra.mxu0 %v1292
    %1848 = vmatprep.subr.bf16.mxu0 %v1291
    %1849 = vmatpush2.bf16.msra.mxu0 %v1290
    %1850 = vmatprep.subr.bf16.mxu0 %v1289
    %1851 = vmatpush2.bf16.msra.mxu0 %v1288
    %1852 = vmatprep.mubr.bf16.mxu0 %v100
    %1853 = vmatmul.mubr.bf16.gmra.mxu0 %v99
    %v1854 = vpop.f32.mrf.mxu0
    %v1855 = vadd.f32 %v1814, %v1854
    %v1856 = vpop.f32.mrf.mxu0
    %v1857 = vadd.f32 %v1816, %v1856
    %v1858 = vpop.f32.mrf.mxu0
    %v1859 = vpop.f32.mrf.mxu0
    %1860 = vdwg.mxu0
    %1861 = vmatprep.subr.bf16.mxu0 %v1319
    %1862 = vmatpush1.bf16.msra.mxu0 %v1318
    %1863 = vmatprep.subr.bf16.mxu0 %v1317
    %1864 = vmatpush1.bf16.msra.mxu0 %v1316
    %1865 = vmatprep.subr.bf16.mxu0 %v1315
    %1866 = vmatpush1.bf16.msra.mxu0 %v1314
    %1867 = vmatprep.subr.bf16.mxu0 %v1313
    %1868 = vmatpush1.bf16.msra.mxu0 %v1312
    %1869 = vmatprep.subr.bf16.mxu0 %v1311
    %1870 = vmatpush1.bf16.msra.mxu0 %v1310
    %1871 = vmatprep.subr.bf16.mxu0 %v1309
    %1872 = vmatpush1.bf16.msra.mxu0 %v1308
    %1873 = vmatprep.subr.bf16.mxu0 %v1307
    %1874 = vmatpush1.bf16.msra.mxu0 %v1306
    %1875 = vmatprep.subr.bf16.mxu0 %v1305
    %1876 = vmatpush1.bf16.msra.mxu0 %v1304
    %1877 = vmatprep.subr.bf16.mxu0 %v1335
    %1878 = vmatpush2.bf16.msra.mxu0 %v1334
    %1879 = vmatprep.subr.bf16.mxu0 %v1333
    %1880 = vmatpush2.bf16.msra.mxu0 %v1332
    %1881 = vmatprep.subr.bf16.mxu0 %v1331
    %1882 = vmatpush2.bf16.msra.mxu0 %v1330
    %1883 = vmatprep.subr.bf16.mxu0 %v1329
    %1884 = vmatpush2.bf16.msra.mxu0 %v1328
    %1885 = vmatprep.subr.bf16.mxu0 %v1327
    %1886 = vmatpush2.bf16.msra.mxu0 %v1326
    %1887 = vmatprep.subr.bf16.mxu0 %v1325
    %1888 = vmatpush2.bf16.msra.mxu0 %v1324
    %1889 = vmatprep.subr.bf16.mxu0 %v1323
    %1890 = vmatpush2.bf16.msra.mxu0 %v1322
    %1891 = vmatprep.subr.bf16.mxu0 %v1321
    %1892 = vmatpush2.bf16.msra.mxu0 %v1320
    %1893 = vmatprep.mubr.bf16.mxu0 %v102
    %1894 = vmatmul.mubr.bf16.gmra.mxu0 %v101
    %v1895 = vpop.f32.mrf.mxu0
    %v1896 = vadd.f32 %v1855, %v1895
    %v1897 = vpop.f32.mrf.mxu0
    %v1898 = vadd.f32 %v1857, %v1897
    %v1899 = vpop.f32.mrf.mxu0
    %v1900 = vpop.f32.mrf.mxu0
    %1901 = vdwg.mxu0
    %1902 = vmatprep.subr.bf16.mxu0 %v1351
    %1903 = vmatpush1.bf16.msra.mxu0 %v1350
    %1904 = vmatprep.subr.bf16.mxu0 %v1349
    %1905 = vmatpush1.bf16.msra.mxu0 %v1348
    %1906 = vmatprep.subr.bf16.mxu0 %v1347
    %1907 = vmatpush1.bf16.msra.mxu0 %v1346
    %1908 = vmatprep.subr.bf16.mxu0 %v1345
    %1909 = vmatpush1.bf16.msra.mxu0 %v1344
    %1910 = vmatprep.subr.bf16.mxu0 %v1343
    %1911 = vmatpush1.bf16.msra.mxu0 %v1342
    %1912 = vmatprep.subr.bf16.mxu0 %v1341
    %1913 = vmatpush1.bf16.msra.mxu0 %v1340
    %1914 = vmatprep.subr.bf16.mxu0 %v1339
    %1915 = vmatpush1.bf16.msra.mxu0 %v1338
    %1916 = vmatprep.subr.bf16.mxu0 %v1337
    %1917 = vmatpush1.bf16.msra.mxu0 %v1336
    %1918 = vmatprep.subr.bf16.mxu0 %v1367
    %1919 = vmatpush2.bf16.msra.mxu0 %v1366
    %1920 = vmatprep.subr.bf16.mxu0 %v1365
    %1921 = vmatpush2.bf16.msra.mxu0 %v1364
    %1922 = vmatprep.subr.bf16.mxu0 %v1363
    %1923 = vmatpush2.bf16.msra.mxu0 %v1362
    %1924 = vmatprep.subr.bf16.mxu0 %v1361
    %1925 = vmatpush2.bf16.msra.mxu0 %v1360
    %1926 = vmatprep.subr.bf16.mxu0 %v1359
    %1927 = vmatpush2.bf16.msra.mxu0 %v1358
    %1928 = vmatprep.subr.bf16.mxu0 %v1357
    %1929 = vmatpush2.bf16.msra.mxu0 %v1356
    %1930 = vmatprep.subr.bf16.mxu0 %v1355
    %1931 = vmatpush2.bf16.msra.mxu0 %v1354
    %1932 = vmatprep.subr.bf16.mxu0 %v1353
    %1933 = vmatpush2.bf16.msra.mxu0 %v1352
    %1934 = vmatprep.mubr.bf16.mxu0 %v104
    %1935 = vmatmul.mubr.bf16.gmra.mxu0 %v103
    %v1936 = vpop.f32.mrf.mxu0
    %v1937 = vadd.f32 %v1896, %v1936
    %v1938 = vpop.f32.mrf.mxu0
    %v1939 = vadd.f32 %v1898, %v1938
    %v1940 = vpop.f32.mrf.mxu0
    %v1941 = vpop.f32.mrf.mxu0
    %1942 = vdwg.mxu0
    %1943 = vmatprep.subr.bf16.mxu0 %v1383
    %1944 = vmatpush1.bf16.msra.mxu0 %v1382
    %1945 = vmatprep.subr.bf16.mxu0 %v1381
    %1946 = vmatpush1.bf16.msra.mxu0 %v1380
    %1947 = vmatprep.subr.bf16.mxu0 %v1379
    %1948 = vmatpush1.bf16.msra.mxu0 %v1378
    %1949 = vmatprep.subr.bf16.mxu0 %v1377
    %1950 = vmatpush1.bf16.msra.mxu0 %v1376
    %1951 = vmatprep.subr.bf16.mxu0 %v1375
    %1952 = vmatpush1.bf16.msra.mxu0 %v1374
    %1953 = vmatprep.subr.bf16.mxu0 %v1373
    %1954 = vmatpush1.bf16.msra.mxu0 %v1372
    %1955 = vmatprep.subr.bf16.mxu0 %v1371
    %1956 = vmatpush1.bf16.msra.mxu0 %v1370
    %1957 = vmatprep.subr.bf16.mxu0 %v1369
    %1958 = vmatpush1.bf16.msra.mxu0 %v1368
    %1959 = vmatprep.subr.bf16.mxu0 %v1399
    %1960 = vmatpush2.bf16.msra.mxu0 %v1398
    %1961 = vmatprep.subr.bf16.mxu0 %v1397
    %1962 = vmatpush2.bf16.msra.mxu0 %v1396
    %1963 = vmatprep.subr.bf16.mxu0 %v1395
    %1964 = vmatpush2.bf16.msra.mxu0 %v1394
    %1965 = vmatprep.subr.bf16.mxu0 %v1393
    %1966 = vmatpush2.bf16.msra.mxu0 %v1392
    %1967 = vmatprep.subr.bf16.mxu0 %v1391
    %1968 = vmatpush2.bf16.msra.mxu0 %v1390
    %1969 = vmatprep.subr.bf16.mxu0 %v1389
    %1970 = vmatpush2.bf16.msra.mxu0 %v1388
    %1971 = vmatprep.subr.bf16.mxu0 %v1387
    %1972 = vmatpush2.bf16.msra.mxu0 %v1386
    %1973 = vmatprep.subr.bf16.mxu0 %v1385
    %1974 = vmatpush2.bf16.msra.mxu0 %v1384
    %1975 = vmatprep.mubr.bf16.mxu0 %v106
    %1976 = vmatmul.mubr.bf16.gmra.mxu0 %v105
    %v1977 = vpop.f32.mrf.mxu0
    %v1978 = vadd.f32 %v1937, %v1977
    %v1979 = vpop.f32.mrf.mxu0
    %v1980 = vadd.f32 %v1939, %v1979
    %v1981 = vpop.f32.mrf.mxu0
    %v1982 = vpop.f32.mrf.mxu0
    %1983 = vdwg.mxu0
    %v1984 = vmax.f32 %v1978, 0.0
    %v1985 = vmax.f32 %v1980, 0.0
    %v1986 = vld [vmem:[%s4] sm:$0xff]
    %v1987 = vld [vmem:[%s4 + $0x8] sm:$0xff]
    %v1988 = vld [vmem:[%s4 + $0x10] sm:$0xff]
    %v1989 = vld [vmem:[%s4 + $0x18] sm:$0xff]
    %v1990 = vld [vmem:[%s4 + $0x20] sm:$0xff]
    %v1991 = vld [vmem:[%s4 + $0x28] sm:$0xff]
    %v1992 = vld [vmem:[%s4 + $0x30] sm:$0xff]
    %v1993 = vld [vmem:[%s4 + $0x38] sm:$0xff]
    %v1994 = vld [vmem:[%s4 + $0x40] sm:$0xff]
    %v1995 = vld [vmem:[%s4 + $0x48] sm:$0xff]
    %v1996 = vld [vmem:[%s4 + $0x50] sm:$0xff]
    %v1997 = vld [vmem:[%s4 + $0x58] sm:$0xff]
    %v1998 = vld [vmem:[%s4 + $0x60] sm:$0xff]
    %v1999 = vld [vmem:[%s4 + $0x68] sm:$0xff]
    %v2000 = vld [vmem:[%s4 + $0x70] sm:$0xff]
    %v2001 = vld [vmem:[%s4 + $0x78] sm:$0xff]
    %v2002 = vld [vmem:[%s5] sm:$0x3]
    %v2004 = vlaneseq
    %v2005 = vshrl.u32 %v2004, 7
    %v2006 = vsub.s32 0, %v2005
    %v2007 = vrot.slane %v2002, %v2006
    %v2008 = vlaneseq
    %v2009 = vshrl.u32 %v2008, 7
    %v2010 = vsub.s32 1, %v2009
    %v2011 = vrot.slane %v2002, %v2010
    %v2030 = vunpack.c.l.b16 %v1986
    %v2031 = vunpack.c.h.b16 %v1986
    %v2032 = vunpack.c.l.b16 %v1987
    %v2033 = vunpack.c.h.b16 %v1987
    %v2034 = vunpack.c.l.b16 %v1988
    %v2035 = vunpack.c.h.b16 %v1988
    %v2036 = vunpack.c.l.b16 %v1989
    %v2037 = vunpack.c.h.b16 %v1989
    %v2038 = vunpack.c.l.b16 %v1990
    %v2039 = vunpack.c.h.b16 %v1990
    %v2040 = vunpack.c.l.b16 %v1991
    %v2041 = vunpack.c.h.b16 %v1991
    %v2042 = vunpack.c.l.b16 %v1992
    %v2043 = vunpack.c.h.b16 %v1992
    %v2044 = vunpack.c.l.b16 %v1993
    %v2045 = vunpack.c.h.b16 %v1993
    %v2046 = vunpack.c.l.b16 %v1994
    %v2047 = vunpack.c.h.b16 %v1994
    %v2048 = vunpack.c.l.b16 %v1995
    %v2049 = vunpack.c.h.b16 %v1995
    %v2050 = vunpack.c.l.b16 %v1996
    %v2051 = vunpack.c.h.b16 %v1996
    %v2052 = vunpack.c.l.b16 %v1997
    %v2053 = vunpack.c.h.b16 %v1997
    %v2054 = vunpack.c.l.b16 %v1998
    %v2055 = vunpack.c.h.b16 %v1998
    %v2056 = vunpack.c.l.b16 %v1999
    %v2057 = vunpack.c.h.b16 %v1999
    %v2058 = vunpack.c.l.b16 %v2000
    %v2059 = vunpack.c.h.b16 %v2000
    %v2060 = vunpack.c.l.b16 %v2001
    %v2061 = vunpack.c.h.b16 %v2001
    %v2062 = vpack.c.b16 %v2032, %v2030
    %v2063 = vpack.c.b16 %v2033, %v2031
    %v2064 = vpack.c.b16 %v2036, %v2034
    %v2065 = vpack.c.b16 %v2037, %v2035
    %v2066 = vpack.c.b16 %v2040, %v2038
    %v2067 = vpack.c.b16 %v2041, %v2039
    %v2068 = vpack.c.b16 %v2044, %v2042
    %v2069 = vpack.c.b16 %v2045, %v2043
    %v2070 = vpack.c.b16 %v2048, %v2046
    %v2071 = vpack.c.b16 %v2049, %v2047
    %v2072 = vpack.c.b16 %v2052, %v2050
    %v2073 = vpack.c.b16 %v2053, %v2051
    %v2074 = vpack.c.b16 %v2056, %v2054
    %v2075 = vpack.c.b16 %v2057, %v2055
    %v2076 = vpack.c.b16 %v2060, %v2058
    %v2077 = vpack.c.b16 %v2061, %v2059
    %2094 = vmatprep.subr.bf16.mxu0 %v2077
    %2095 = vmatpush1.bf16.msra.mxu0 %v2076
    %2096 = vmatprep.subr.bf16.mxu0 %v2075
    %2097 = vmatpush1.bf16.msra.mxu0 %v2074
    %2098 = vmatprep.subr.bf16.mxu0 %v2073
    %2099 = vmatpush1.bf16.msra.mxu0 %v2072
    %2100 = vmatprep.subr.bf16.mxu0 %v2071
    %2101 = vmatpush1.bf16.msra.mxu0 %v2070
    %2102 = vmatprep.subr.bf16.mxu0 %v2069
    %2103 = vmatpush1.bf16.msra.mxu0 %v2068
    %2104 = vmatprep.subr.bf16.mxu0 %v2067
    %2105 = vmatpush1.bf16.msra.mxu0 %v2066
    %2106 = vmatprep.subr.bf16.mxu0 %v2065
    %2107 = vmatpush1.bf16.msra.mxu0 %v2064
    %2108 = vmatprep.subr.bf16.mxu0 %v2063
    %2109 = vmatpush1.bf16.msra.mxu0 %v2062
    %2110 = vmatprep.subr.bf16.mxu0 0
    %2111 = vmatpush2.bf16.msra.mxu0 0
    %2112 = vmatprep.subr.bf16.mxu0 0
    %2113 = vmatpush2.bf16.msra.mxu0 0
    %2114 = vmatprep.subr.bf16.mxu0 0
    %2115 = vmatpush2.bf16.msra.mxu0 0
    %2116 = vmatprep.subr.bf16.mxu0 0
    %2117 = vmatpush2.bf16.msra.mxu0 0
    %2118 = vmatprep.subr.bf16.mxu0 0
    %2119 = vmatpush2.bf16.msra.mxu0 0
    %2120 = vmatprep.subr.bf16.mxu0 0
    %2121 = vmatpush2.bf16.msra.mxu0 0
    %2122 = vmatprep.subr.bf16.mxu0 0
    %2123 = vmatpush2.bf16.msra.mxu0 0
    %2124 = vmatprep.subr.bf16.mxu0 0
    %2125 = vmatpush2.bf16.msra.mxu0 0
    %2126 = vmatprep.mubr.bf16.mxu0 0
    %2127 = vmatmul.mubr.bf16.gmra.mxu0 %v107
    %v2128 = vpop.f32.mrf.mxu0
    %v2129 = vadd.f32 %v2007, %v2128
    %v2130 = vpop.f32.mrf.mxu0
    %v2131 = vadd.f32 %v2011, %v2130
    %v2132 = vpop.f32.mrf.mxu0
    %v2133 = vpop.f32.mrf.mxu0
    %2134 = vdwg.mxu0
    %v2135 = vpack.c.bf16 %v1984, %v1984
    %v2136 = vpack.c.bf16 %v1985, %v1985
    %v2137 = vld [vmem:[#allocation4] sm:$0xf]
    %v2138 = vld [vmem:[#allocation4 + $0x4] sm:$0xf]
    %v2139 = vld [vmem:[#allocation4 + $0x8] sm:$0xf]
    %v2140 = vld [vmem:[#allocation4 + $0xc] sm:$0xf]
    %v2141 = vld [vmem:[#allocation4 + $0x10] sm:$0xf]
    %v2142 = vld [vmem:[#allocation4 + $0x14] sm:$0xf]
    %v2143 = vld [vmem:[#allocation4 + $0x18] sm:$0xf]
    %v2144 = vld [vmem:[#allocation4 + $0x1c] sm:$0xf]
    %v2145 = vld [vmem:[#allocation4 + $0x20] sm:$0xf]
    %v2146 = vld [vmem:[#allocation4 + $0x24] sm:$0xf]
    %v2147 = vld [vmem:[#allocation4 + $0x28] sm:$0xf]
    %v2148 = vld [vmem:[#allocation4 + $0x2c] sm:$0xf]
    %v2149 = vld [vmem:[#allocation4 + $0x30] sm:$0xf]
    %v2150 = vld [vmem:[#allocation4 + $0x34] sm:$0xf]
    %v2151 = vld [vmem:[#allocation4 + $0x38] sm:$0xf]
    %v2152 = vld [vmem:[#allocation4 + $0x3c] sm:$0xf]
    %v2153 = vld [vmem:[#allocation4 + $0x40] sm:$0xf]
    %v2154 = vld [vmem:[#allocation4 + $0x44] sm:$0xf]
    %v2155 = vld [vmem:[#allocation4 + $0x48] sm:$0xf]
    %v2156 = vld [vmem:[#allocation4 + $0x4c] sm:$0xf]
    %v2157 = vld [vmem:[#allocation4 + $0x50] sm:$0xf]
    %v2158 = vld [vmem:[#allocation4 + $0x54] sm:$0xf]
    %v2159 = vld [vmem:[#allocation4 + $0x58] sm:$0xf]
    %v2160 = vld [vmem:[#allocation4 + $0x5c] sm:$0xf]
    %v2161 = vld [vmem:[#allocation4 + $0x60] sm:$0xf]
    %v2162 = vld [vmem:[#allocation4 + $0x64] sm:$0xf]
    %v2163 = vld [vmem:[#allocation4 + $0x68] sm:$0xf]
    %v2164 = vld [vmem:[#allocation4 + $0x6c] sm:$0xf]
    %v2165 = vld [vmem:[#allocation4 + $0x70] sm:$0xf]
    %v2166 = vld [vmem:[#allocation4 + $0x74] sm:$0xf]
    %v2167 = vld [vmem:[#allocation4 + $0x78] sm:$0xf]
    %v2168 = vld [vmem:[#allocation4 + $0x7c] sm:$0xf]
    %v2169 = vpack.c.bf16 %v2129, %v2129
    %v2170 = vpack.c.bf16 %v2131, %v2131
    %v2171 = vld [vmem:[#allocation6] sm:$0xf]
    %v2172 = vld [vmem:[#allocation6 + $0x4] sm:$0xf]
    %v2173 = vld [vmem:[#allocation6 + $0x8] sm:$0xf]
    %v2174 = vld [vmem:[#allocation6 + $0xc] sm:$0xf]
    %v2175 = vld [vmem:[#allocation6 + $0x10] sm:$0xf]
    %v2176 = vld [vmem:[#allocation6 + $0x14] sm:$0xf]
    %v2177 = vld [vmem:[#allocation6 + $0x18] sm:$0xf]
    %v2178 = vld [vmem:[#allocation6 + $0x1c] sm:$0xf]
    %v2179 = vld [vmem:[#allocation6 + $0x20] sm:$0xf]
    %v2180 = vld [vmem:[#allocation6 + $0x24] sm:$0xf]
    %v2181 = vld [vmem:[#allocation6 + $0x28] sm:$0xf]
    %v2182 = vld [vmem:[#allocation6 + $0x2c] sm:$0xf]
    %v2183 = vld [vmem:[#allocation6 + $0x30] sm:$0xf]
    %v2184 = vld [vmem:[#allocation6 + $0x34] sm:$0xf]
    %v2185 = vld [vmem:[#allocation6 + $0x38] sm:$0xf]
    %v2186 = vld [vmem:[#allocation6 + $0x3c] sm:$0xf]
    %v2187 = vld [vmem:[#allocation6 + $0x40] sm:$0xf]
    %v2188 = vld [vmem:[#allocation6 + $0x44] sm:$0xf]
    %v2189 = vld [vmem:[#allocation6 + $0x48] sm:$0xf]
    %v2190 = vld [vmem:[#allocation6 + $0x4c] sm:$0xf]
    %v2191 = vld [vmem:[#allocation6 + $0x50] sm:$0xf]
    %v2192 = vld [vmem:[#allocation6 + $0x54] sm:$0xf]
    %v2193 = vld [vmem:[#allocation6 + $0x58] sm:$0xf]
    %v2194 = vld [vmem:[#allocation6 + $0x5c] sm:$0xf]
    %v2195 = vld [vmem:[#allocation6 + $0x60] sm:$0xf]
    %v2196 = vld [vmem:[#allocation6 + $0x64] sm:$0xf]
    %v2197 = vld [vmem:[#allocation6 + $0x68] sm:$0xf]
    %v2198 = vld [vmem:[#allocation6 + $0x6c] sm:$0xf]
    %v2199 = vld [vmem:[#allocation6 + $0x70] sm:$0xf]
    %v2200 = vld [vmem:[#allocation6 + $0x74] sm:$0xf]
    %v2201 = vld [vmem:[#allocation6 + $0x78] sm:$0xf]
    %v2202 = vld [vmem:[#allocation6 + $0x7c] sm:$0xf]
    %v2235 = vunpack.c.l.b16 %v2171
    %v2236 = vunpack.c.l.b16 %v2172
    %v2237 = vunpack.c.l.b16 %v2173
    %v2238 = vunpack.c.l.b16 %v2174
    %v2239 = vunpack.c.l.b16 %v2175
    %v2240 = vunpack.c.l.b16 %v2176
    %v2241 = vunpack.c.l.b16 %v2177
    %v2242 = vunpack.c.l.b16 %v2178
    %v2243 = vunpack.c.l.b16 %v2179
    %v2244 = vunpack.c.l.b16 %v2180
    %v2245 = vunpack.c.l.b16 %v2181
    %v2246 = vunpack.c.l.b16 %v2182
    %v2247 = vunpack.c.l.b16 %v2183
    %v2248 = vunpack.c.l.b16 %v2184
    %v2249 = vunpack.c.l.b16 %v2185
    %v2250 = vunpack.c.l.b16 %v2186
    %v2251 = vunpack.c.l.b16 %v2187
    %v2252 = vunpack.c.l.b16 %v2188
    %v2253 = vunpack.c.l.b16 %v2189
    %v2254 = vunpack.c.l.b16 %v2190
    %v2255 = vunpack.c.l.b16 %v2191
    %v2256 = vunpack.c.l.b16 %v2192
    %v2257 = vunpack.c.l.b16 %v2193
    %v2258 = vunpack.c.l.b16 %v2194
    %v2259 = vunpack.c.l.b16 %v2195
    %v2260 = vunpack.c.l.b16 %v2196
    %v2261 = vunpack.c.l.b16 %v2197
    %v2262 = vunpack.c.l.b16 %v2198
    %v2263 = vunpack.c.l.b16 %v2199
    %v2264 = vunpack.c.l.b16 %v2200
    %v2265 = vunpack.c.l.b16 %v2201
    %v2266 = vunpack.c.l.b16 %v2202
    %v2267 = vpack.c.b16 %v2236, %v2235
    %v2268 = vpack.c.b16 %v2238, %v2237
    %v2269 = vpack.c.b16 %v2240, %v2239
    %v2270 = vpack.c.b16 %v2242, %v2241
    %v2271 = vpack.c.b16 %v2244, %v2243
    %v2272 = vpack.c.b16 %v2246, %v2245
    %v2273 = vpack.c.b16 %v2248, %v2247
    %v2274 = vpack.c.b16 %v2250, %v2249
    %v2275 = vpack.c.b16 %v2252, %v2251
    %v2276 = vpack.c.b16 %v2254, %v2253
    %v2277 = vpack.c.b16 %v2256, %v2255
    %v2278 = vpack.c.b16 %v2258, %v2257
    %v2279 = vpack.c.b16 %v2260, %v2259
    %v2280 = vpack.c.b16 %v2262, %v2261
    %v2281 = vpack.c.b16 %v2264, %v2263
    %v2282 = vpack.c.b16 %v2266, %v2265
    %2299 = vmatprep.subr.bf16.mxu0 0
    %2300 = vmatpush1.bf16.msra.mxu0 %v2274
    %2301 = vmatprep.subr.bf16.mxu0 0
    %2302 = vmatpush1.bf16.msra.mxu0 %v2273
    %2303 = vmatprep.subr.bf16.mxu0 0
    %2304 = vmatpush1.bf16.msra.mxu0 %v2272
    %2305 = vmatprep.subr.bf16.mxu0 0
    %2306 = vmatpush1.bf16.msra.mxu0 %v2271
    %2307 = vmatprep.subr.bf16.mxu0 0
    %2308 = vmatpush1.bf16.msra.mxu0 %v2270
    %2309 = vmatprep.subr.bf16.mxu0 0
    %2310 = vmatpush1.bf16.msra.mxu0 %v2269
    %2311 = vmatprep.subr.bf16.mxu0 0
    %2312 = vmatpush1.bf16.msra.mxu0 %v2268
    %2313 = vmatprep.subr.bf16.mxu0 0
    %2314 = vmatpush1.bf16.msra.mxu0 %v2267
    %2315 = vmatprep.subr.bf16.mxu0 0
    %2316 = vmatpush2.bf16.msra.mxu0 %v2282
    %2317 = vmatprep.subr.bf16.mxu0 0
    %2318 = vmatpush2.bf16.msra.mxu0 %v2281
    %2319 = vmatprep.subr.bf16.mxu0 0
    %2320 = vmatpush2.bf16.msra.mxu0 %v2280
    %2321 = vmatprep.subr.bf16.mxu0 0
    %2322 = vmatpush2.bf16.msra.mxu0 %v2279
    %2323 = vmatprep.subr.bf16.mxu0 0
    %2324 = vmatpush2.bf16.msra.mxu0 %v2278
    %2325 = vmatprep.subr.bf16.mxu0 0
    %2326 = vmatpush2.bf16.msra.mxu0 %v2277
    %2327 = vmatprep.subr.bf16.mxu0 0
    %2328 = vmatpush2.bf16.msra.mxu0 %v2276
    %2329 = vmatprep.subr.bf16.mxu0 0
    %2330 = vmatpush2.bf16.msra.mxu0 %v2275
    %2331 = vmatprep.mubr.bf16.mxu0 %v2170
    %2332 = vmatmul.mubr.bf16.gmra.mxu0 %v2169
    %v2333 = vpop.f32.mrf.mxu0
    %v2334 = vadd.f32 0.0, %v2333
    %v2335 = vpop.f32.mrf.mxu0
    %v2336 = vpop.f32.mrf.mxu0
    %v2337 = vpop.f32.mrf.mxu0
    %2338 = vdwg.mxu0
    %v2371 = vunpack.c.l.b16 %v2137
    %v2372 = vunpack.c.l.b16 %v2138
    %v2373 = vunpack.c.l.b16 %v2139
    %v2374 = vunpack.c.l.b16 %v2140
    %v2375 = vunpack.c.l.b16 %v2141
    %v2376 = vunpack.c.l.b16 %v2142
    %v2377 = vunpack.c.l.b16 %v2143
    %v2378 = vunpack.c.l.b16 %v2144
    %v2379 = vunpack.c.l.b16 %v2145
    %v2380 = vunpack.c.l.b16 %v2146
    %v2381 = vunpack.c.l.b16 %v2147
    %v2382 = vunpack.c.l.b16 %v2148
    %v2383 = vunpack.c.l.b16 %v2149
    %v2384 = vunpack.c.l.b16 %v2150
    %v2385 = vunpack.c.l.b16 %v2151
    %v2386 = vunpack.c.l.b16 %v2152
    %v2387 = vunpack.c.l.b16 %v2153
    %v2388 = vunpack.c.l.b16 %v2154
    %v2389 = vunpack.c.l.b16 %v2155
    %v2390 = vunpack.c.l.b16 %v2156
    %v2391 = vunpack.c.l.b16 %v2157
    %v2392 = vunpack.c.l.b16 %v2158
    %v2393 = vunpack.c.l.b16 %v2159
    %v2394 = vunpack.c.l.b16 %v2160
    %v2395 = vunpack.c.l.b16 %v2161
    %v2396 = vunpack.c.l.b16 %v2162
    %v2397 = vunpack.c.l.b16 %v2163
    %v2398 = vunpack.c.l.b16 %v2164
    %v2399 = vunpack.c.l.b16 %v2165
    %v2400 = vunpack.c.l.b16 %v2166
    %v2401 = vunpack.c.l.b16 %v2167
    %v2402 = vunpack.c.l.b16 %v2168
    %v2403 = vpack.c.b16 %v2372, %v2371
    %v2404 = vpack.c.b16 %v2374, %v2373
    %v2405 = vpack.c.b16 %v2376, %v2375
    %v2406 = vpack.c.b16 %v2378, %v2377
    %v2407 = vpack.c.b16 %v2380, %v2379
    %v2408 = vpack.c.b16 %v2382, %v2381
    %v2409 = vpack.c.b16 %v2384, %v2383
    %v2410 = vpack.c.b16 %v2386, %v2385
    %v2411 = vpack.c.b16 %v2388, %v2387
    %v2412 = vpack.c.b16 %v2390, %v2389
    %v2413 = vpack.c.b16 %v2392, %v2391
    %v2414 = vpack.c.b16 %v2394, %v2393
    %v2415 = vpack.c.b16 %v2396, %v2395
    %v2416 = vpack.c.b16 %v2398, %v2397
    %v2417 = vpack.c.b16 %v2400, %v2399
    %v2418 = vpack.c.b16 %v2402, %v2401
    %2435 = vmatprep.subr.bf16.mxu0 0
    %2436 = vmatpush1.bf16.msra.mxu0 %v2410
    %2437 = vmatprep.subr.bf16.mxu0 0
    %2438 = vmatpush1.bf16.msra.mxu0 %v2409
    %2439 = vmatprep.subr.bf16.mxu0 0
    %2440 = vmatpush1.bf16.msra.mxu0 %v2408
    %2441 = vmatprep.subr.bf16.mxu0 0
    %2442 = vmatpush1.bf16.msra.mxu0 %v2407
    %2443 = vmatprep.subr.bf16.mxu0 0
    %2444 = vmatpush1.bf16.msra.mxu0 %v2406
    %2445 = vmatprep.subr.bf16.mxu0 0
    %2446 = vmatpush1.bf16.msra.mxu0 %v2405
    %2447 = vmatprep.subr.bf16.mxu0 0
    %2448 = vmatpush1.bf16.msra.mxu0 %v2404
    %2449 = vmatprep.subr.bf16.mxu0 0
    %2450 = vmatpush1.bf16.msra.mxu0 %v2403
    %2451 = vmatprep.subr.bf16.mxu0 0
    %2452 = vmatpush2.bf16.msra.mxu0 %v2418
    %2453 = vmatprep.subr.bf16.mxu0 0
    %2454 = vmatpush2.bf16.msra.mxu0 %v2417
    %2455 = vmatprep.subr.bf16.mxu0 0
    %2456 = vmatpush2.bf16.msra.mxu0 %v2416
    %2457 = vmatprep.subr.bf16.mxu0 0
    %2458 = vmatpush2.bf16.msra.mxu0 %v2415
    %2459 = vmatprep.subr.bf16.mxu0 0
    %2460 = vmatpush2.bf16.msra.mxu0 %v2414
    %2461 = vmatprep.subr.bf16.mxu0 0
    %2462 = vmatpush2.bf16.msra.mxu0 %v2413
    %2463 = vmatprep.subr.bf16.mxu0 0
    %2464 = vmatpush2.bf16.msra.mxu0 %v2412
    %2465 = vmatprep.subr.bf16.mxu0 0
    %2466 = vmatpush2.bf16.msra.mxu0 %v2411
    %2467 = vmatprep.mubr.bf16.mxu0 %v2136
    %2468 = vmatmul.mubr.bf16.gmra.mxu0 %v2135
    %v2469 = vpop.f32.mrf.mxu0
    %v2470 = vadd.f32 %v2334, %v2469
    %v2471 = vpop.f32.mrf.mxu0
    %v2472 = vpop.f32.mrf.mxu0
    %v2473 = vpop.f32.mrf.mxu0
    %2474 = vdwg.mxu0
    %v2475 = vld [vmem:[%s8] sm:$0x1]
    %v2477 = vlaneseq
    %v2478 = vshrl.u32 %v2477, 7
    %v2479 = vsub.s32 0, %v2478
    %v2480 = vrot.slane %v2475, %v2479
    %v2482 = vadd.f32 %v2470, %v2480
    %2483 = vst [vmem:[%s9] sm:$0xff] %v2482
    // Predicated region
    $region50: #{_combined_forward_impl.1} parent=1 // pred_check
      _
    $region51: #{_combined_forward_impl.1} parent=1 // pred_check_branch
      %2485 = sbr.rel (0) target = $region53
    $region52: #{_combined_forward_impl.1} parent=1 // pred_region
      _
    $region53: #{_combined_forward_impl.1} parent=1 // pred_fallthru
      _
    // Predicated region
    $region54: #{_combined_forward_impl.1} parent=1 // pred_check
      _
    $region55: #{_combined_forward_impl.1} parent=1 // pred_check_branch
      %2487 = sbr.rel (0) target = $region57
    $region56: #{_combined_forward_impl.1} parent=1 // pred_region
      _
    $region57: #{_combined_forward_impl.1} parent=1 // pred_fallthru
      _
    %2488 = vsyncpa [#allocation3], 1
    %2489 = vsyncpa [#allocation5], 1

</llo_original>
